<compile_context>
chip_gen: v5e
topology: v5e:2x2
jax: 0.10.0
libtpu: 0.0.40
codegen_flags: <defaults>
</compile_context>

<pallas_src>
import jax
import jax.numpy as jnp
from jax.experimental import pallas as pl
from jax.experimental.pallas import tpu as pltpu

N_NODES = 8
N_NODE_FEATS = 4
N_EDGE_FEATS = 4
HIDDEN = 8
NUM_HEADS = 8            # conv1 has 8 heads, conv2 has 1 head (fixed by the PyTorch module)
NUM_CLASSES = 4
HD = NUM_HEADS * HIDDEN  # 64
NEG_SLOPE = 0.2          # dgl EdgeGATConv leaky_relu default
NEG_INF = -1e30
BATCH = 4
GRAPHS_PER_STEP = 2      # 2 steps for BATCH=4: keeps both v7x TCs busy, near-minimal overhead on v5e/v6e

# ---------------- per-graph data slab layout (rows x 8 lanes) ----------------
# rows  0..7   : mask             (8, 8)   [dst, src]
# rows  8..15  : x (lane-padded)  (8, 8)   node features, lanes 0..3 real
# rows 16..23  : x^T (row-padded) (8, 8)   rows 0..3 real
# rows 24..55  : edge2d           (32, 8)  [(dst*Fe+f), src]
# rows 56..119 : edge_flat (pad)  (64, 8)  [(dst*N+src), f]  lanes 0..3 real
DATA_ROWS = 120

# ---------------- parameter slab layout (static, all row offsets 8-aligned) ----------------
PARAM_W = 136
PARAM_LAYOUT = [
    ("w1cat",   8, 136),   # [W1 | W1_res | W1@arS]                    (real rows: 4)
    ("logitsl", 64, 40),   # [i_out@(W1@alS)^T lane-padded to 8 | a_ve]
    ("i_out",   64, 8),    # row (h*8+d) -> e_h
    ("we1",     8, 64),    # edge-feature weights, heads fused          (real rows: 4)
    ("b1",      1, 64),
    ("e_tile",  8, 64),    # [s', d*8+s] = delta(s', s)
    ("colm",    64, 64),   # [(h,d), (d',s)] = delta(d, d')
    ("blkm",    64, 64),   # [(h,d), (h',k)] = delta(h, h')
    ("w2cat",   64, 18),   # [W2 | W2_res | W2@al2 | W2@ar2]
    ("bve2",    8, 32),    # [d, (d',f)] = delta(d,d') * (We2@ae2)[f]
    ("we2",     8, 8),     # (real rows: 4)
    ("b2",      1, 8),
    ("colm2",   8, 64),    # [d, (d',s)] = delta(d, d')
    ("wswn",    8, 8),     # [Ws | Wn]
    ("b3",      1, 4),
]


def _layout_offsets():
    offs, row = {}, 0
    for name, r, c in PARAM_LAYOUT:
        offs[name] = (row, r, c)
        row += ((r + 7) // 8) * 8
    return offs, row


PARAM_OFFSETS, PARAM_ROWS = _layout_offsets()


def _stack_rows(a, reps):
    # sublane tile [a; a; ...; a] -- pure layout/VPU work, keeps the MXU chain short
    return jnp.concatenate([a] * reps, axis=0)


def _model_kernel(d_ref, p_ref, o_ref):
    def dot(a, b):
        return jnp.dot(a, b, preferred_element_type=jnp.float32)

    def P(name):
        off, r, c = PARAM_OFFSETS[name]
        return p_ref[off:off + r, 0:c]

    w1cat, logitsl, i_out = P("w1cat"), P("logitsl"), P("i_out")
    we1, b1, e_tile = P("we1"), P("b1"), P("e_tile")
    colm, blkm = P("colm"), P("blkm")
    w2cat, bve2, we2, b2, colm2 = P("w2cat"), P("bve2"), P("we2"), P("b2"), P("colm2")
    wswn, b3 = P("wswn"), P("b3")

    for g in range(GRAPHS_PER_STEP):            # unrolled: independent graphs interleave on the MXU
        mask = d_ref[g, 0:8, :]                  # (8, 8)   [dst, src]
        x_pad = d_ref[g, 8:16, :]                # (8, 8)   node feats, lanes 0..3 real
        rhs_lg = d_ref[g, 16:56, :]              # (40, 8)  [x^T ; edge2d]
        edge2d = d_ref[g, 24:56, :]              # (32, 8)  [(dst*Fe+f), src]
        eflat = d_ref[g, 56:120, :]              # (64, 8)  [(dst*N+src), f]

        # ---- conv1: EdgeGATConv(4 -> 8, 8 heads), heads fused on the sublane axis ----
        fr = dot(x_pad, w1cat)                   # (8, 136) = [feat | res1 | er]
        feat = fr[:, 0:HD]                       # (8, 64)  feat[src, h*D+k]
        res1 = fr[:, HD:2 * HD]                  # (8, 64)
        er = fr[:, 2 * HD:2 * HD + NUM_HEADS]    # (8, 8)   er[node, head]

        lg = dot(logitsl, rhs_lg)                # (64, 8)  el[src,h] + ee[h,dst,src]; rows (h*8+dst)
        er_col = jnp.sum(_stack_rows(er, NUM_HEADS) * i_out, axis=1, keepdims=True)  # (64, 1)
        logits = lg + er_col
        logits = jnp.where(logits >= 0.0, logits, NEG_SLOPE * logits)                # leaky_relu(0.2)
        mask_big = _stack_rows(mask, NUM_HEADS)                                      # (64, 8)
        logits = jnp.where(mask_big > 0.0, logits, NEG_INF)                          # only real edges
        mx = jnp.max(logits, axis=1, keepdims=True)
        p = jnp.exp(logits - mx) * mask_big
        alpha = p * pl.reciprocal(jnp.sum(p, axis=1, keepdims=True), approx=False)   # edge softmax

        # messages: out[d, h*D+k] = sum_s alpha[h,d,s] * (feat[s, h*D+k] + (edge@We1)[d,s, h*D+k])
        payload = _stack_rows(feat, N_NODES) + dot(eflat, we1)        # (64, 64) rows (dst*8+src)
        a_big = dot(alpha, e_tile) * colm                             # (64, 64) alpha, dst-block-diag
        big = dot(a_big, payload) * blkm                              # (64, 64) rows (h,dst), cols (h,k)
        msgs = big[0:N_NODES, :]
        for h in range(1, NUM_HEADS):                                 # sum the 8 head blocks (VALU)
            msgs = msgs + big[h * N_NODES:(h + 1) * N_NODES, :]
        h1 = jnp.maximum(msgs + res1 + b1, 0.0)                       # relu, (8, 64)

        # ---- conv2: EdgeGATConv(64 -> 8, 1 head) ----
        fr2 = dot(h1, w2cat)                      # (8, 18) = [feat2 | res2 | el2 | er2]
        feat2 = fr2[:, 0:HIDDEN]
        res2 = fr2[:, HIDDEN:2 * HIDDEN]
        el2 = fr2[:, 2 * HIDDEN:2 * HIDDEN + 1]   # (8, 1) per-src
        er2 = fr2[:, 2 * HIDDEN + 1:2 * HIDDEN + 2]
        logits2 = el2.T + er2 + dot(bve2, edge2d)
        logits2 = jnp.where(logits2 >= 0.0, logits2, NEG_SLOPE * logits2)
        logits2 = jnp.where(mask > 0.0, logits2, NEG_INF)
        mx2 = jnp.max(logits2, axis=1, keepdims=True)
        p2 = jnp.exp(logits2 - mx2) * mask
        alpha2 = p2 * pl.reciprocal(jnp.sum(p2, axis=1, keepdims=True), approx=False)

        payload2 = _stack_rows(feat2, N_NODES) + dot(eflat, we2)      # (64, 8)
        a2_big = dot(alpha2, e_tile) * colm2                          # (8, 64)
        msg2 = dot(a2_big, payload2)                                  # (8, 8)
        h2 = jnp.maximum(msg2 + res2 + b2, 0.0)                       # relu, (8, 8)

        # ---- conv3: SAGEConv(8 -> 4, 'mean') + softmax ----
        deg = jnp.maximum(jnp.sum(mask, axis=1, keepdims=True), 1.0)  # in-degree (>=1 via self loops)
        t = dot(h2, wswn)                                             # (8, 8) = [h2@Ws | h2@Wn]
        logits3 = (t[:, 0:NUM_CLASSES]
                   + dot(mask, t[:, NUM_CLASSES:2 * NUM_CLASSES]) * pl.reciprocal(deg, approx=False)
                   + b3)
        mx3 = jnp.max(logits3, axis=1, keepdims=True)
        p3 = jnp.exp(logits3 - mx3)
        out = p3 * pl.reciprocal(jnp.sum(p3, axis=1, keepdims=True), approx=False)
        o_ref[g * N_NODES:(g + 1) * N_NODES, :] = out


@jax.jit
def model_forward(data_slab, param_slab):
    b = data_slab.shape[0]
    steps = b // GRAPHS_PER_STEP
    return pl.pallas_call(
        _model_kernel,
        out_shape=jax.ShapeDtypeStruct((b * N_NODES, NUM_CLASSES), jnp.float32),
        grid=(steps,),
        in_specs=[
            pl.BlockSpec((GRAPHS_PER_STEP, DATA_ROWS, N_NODES), lambda i: (i, 0, 0)),
            pl.BlockSpec(memory_space=pltpu.MemorySpace.VMEM),
        ],
        out_specs=pl.BlockSpec((GRAPHS_PER_STEP * N_NODES, NUM_CLASSES), lambda i: (i, 0)),
        compiler_params=pltpu.CompilerParams(dimension_semantics=("parallel",)),
    )(data_slab, param_slab)


# ---------------- host-side packing / parameter folding ----------------
def pack_data(node_x, edge3d, mask):
    """Pack mask / x / x^T / edge2d / edge_flat into one (B, 120, 8) slab (1 DMA per step)."""
    b = node_x.shape[0]
    x_pad = jnp.pad(node_x, ((0, 0), (0, 0), (0, N_NODES - N_NODE_FEATS)))
    xt_pad = jnp.pad(jnp.swapaxes(node_x, 1, 2), ((0, 0), (0, N_NODES - N_NODE_FEATS), (0, 0)))
    edge2d = jnp.transpose(edge3d, (0, 1, 3, 2)).reshape(b, N_NODES * N_EDGE_FEATS, N_NODES)
    eflat = jnp.pad(edge3d.reshape(b, N_NODES * N_NODES, N_EDGE_FEATS),
                    ((0, 0), (0, 0), (0, N_NODES - N_EDGE_FEATS)))
    return jnp.concatenate([mask, x_pad, xt_pad, edge2d, eflat], axis=1)


def pack_params(folded):
    slab = jnp.zeros((PARAM_ROWS, PARAM_W), jnp.float32)
    for name, rows, cols in PARAM_LAYOUT:
        a = jnp.asarray(folded[name], jnp.float32)
        assert a.shape[0] <= rows and a.shape[1] <= cols, (name, a.shape)
        off = PARAM_OFFSETS[name][0]
        slab = slab.at[off:off + a.shape[0], 0:a.shape[1]].set(a)
    return slab


def fold_params(raw):
    eyeN = jnp.eye(N_NODES, dtype=jnp.float32)
    eyeH = jnp.eye(NUM_HEADS, dtype=jnp.float32)

    alS = (raw['al1'][:, :, None] * eyeH[:, None, :]).reshape(HD, NUM_HEADS)   # (64, 8)
    arS = (raw['ar1'][:, :, None] * eyeH[:, None, :]).reshape(HD, NUM_HEADS)
    a_l = raw['w1'] @ alS                                                      # (4, 8): el = x @ a_l
    a_r = raw['w1'] @ arS                                                      # (4, 8): er = x @ a_r
    w1cat = jnp.concatenate([raw['w1'], raw['wr1'], a_r], axis=1)              # (4, 136)

    i_out = jnp.repeat(eyeH, N_NODES, axis=0)                                  # (64, 8)
    ve1 = jnp.einsum('fhk,hk->hf',
                     raw['we1'].reshape(N_EDGE_FEATS, NUM_HEADS, HIDDEN), raw['ae1'])      # (8, 4)
    a_ve = (ve1[:, None, None, :] * eyeN[None, :, :, None]).reshape(HD, N_NODES * N_EDGE_FEATS)
    m1 = i_out @ a_l.T                                                         # (64, 4)
    logitsl = jnp.concatenate(
        [m1, jnp.zeros((HD, N_NODES - N_NODE_FEATS), jnp.float32), a_ve], axis=1)          # (64, 40)

    r64 = jnp.arange(HD)
    e_tile = jnp.tile(eyeN, (1, N_NODES))                                                  # (8, 64)
    colm = (r64[:, None] % N_NODES == r64[None, :] // N_NODES).astype(jnp.float32)         # (64, 64)
    blkm = (r64[:, None] // N_NODES == r64[None, :] // HIDDEN).astype(jnp.float32)         # (64, 64)
    colm2 = (jnp.arange(N_NODES)[:, None] == r64[None, :] // N_NODES).astype(jnp.float32)  # (8, 64)

    w2cat = jnp.concatenate([raw['w2'], raw['wr2'],
                             (raw['w2'] @ raw['al2'][0])[:, None],
                             (raw['w2'] @ raw['ar2'][0])[:, None]], axis=1)                # (64, 18)
    ve2 = raw['we2'] @ raw['ae2'][0]                                                       # (4,)
    bve2 = (eyeN[:, :, None] * ve2[None, None, :]).reshape(N_NODES, N_NODES * N_EDGE_FEATS)
    wswn = jnp.concatenate([raw['ws'], raw['wn']], axis=1)                                 # (8, 8)

    return {
        'w1cat': w1cat, 'logitsl': logitsl, 'i_out': i_out, 'we1': raw['we1'],
        'b1': raw['b1'].reshape(1, HD), 'e_tile': e_tile, 'colm': colm, 'blkm': blkm,
        'w2cat': w2cat, 'bve2': bve2, 'we2': raw['we2'], 'b2': raw['b2'],
        'colm2': colm2, 'wswn': wswn, 'b3': raw['b3'],
    }


# ---------------- pure-JAX reference (straightforward 4-D formulation) ----------------
def _ref_edge_gat(x, edge3d, mask, w, attn_l, attn_r, attn_e, we, wres, b, heads, d):
    n = x.shape[0]
    feat = (x @ w).reshape(n, heads, d)
    feate = (edge3d.reshape(n * n, -1) @ we).reshape(n, n, heads, d)
    el = jnp.sum(feat * attn_l[None], axis=-1)
    er = jnp.sum(feat * attn_r[None], axis=-1)
    ee = jnp.sum(feate * attn_e[None, None], axis=-1)
    e = el[None, :, :] + er[:, None, :] + ee                     # [dst, src, head]
    e = jnp.where(e >= 0, e, NEG_SLOPE * e)
    e = jnp.where(mask[:, :, None] > 0, e, NEG_INF)
    e = e - jnp.max(e, axis=1, keepdims=True)
    p = jnp.exp(e) * mask[:, :, None]
    alpha = p / jnp.sum(p, axis=1, keepdims=True)
    msg = feat[None, :, :, :] + feate
    out = jnp.sum(alpha[..., None] * msg, axis=1)
    return out + (x @ wres).reshape(n, heads, d) + b[None]


def _ref_forward(x, edge3d, mask, r):
    n = x.shape[0]
    h1 = _ref_edge_gat(x, edge3d, mask, r['w1'], r['al1'], r['ar1'], r['ae1'],
                       r['we1'], r['wr1'], r['b1'], NUM_HEADS, HIDDEN)
    h1 = jax.nn.relu(h1.reshape(n, -1))
    h2 = _ref_edge_gat(h1, edge3d, mask, r['w2'], r['al2'], r['ar2'], r['ae2'],
                       r['we2'], r['wr2'], r['b2'], 1, HIDDEN)
    h2 = jax.nn.relu(h2.reshape(n, -1))
    deg = jnp.sum(mask, axis=1, keepdims=True)
    h_neigh = (mask @ h2) / deg
    logits = h2 @ r['ws'] + h_neigh @ r['wn'] + r['b3']
    return jax.nn.softmax(logits, axis=1)


if __name__ == "__main__":
    key = jax.random.PRNGKey(0)
    ks = jax.random.split(key, 20)

    # graph: self loops + ring + chords (every node has in-degree >= 1, as DGL requires)
    src = jnp.array([0, 1, 2, 3, 4, 5, 6, 7, 0, 1, 2, 3, 4, 5, 6, 7, 0, 2, 4, 6], dtype=jnp.int32)
    dst = jnp.array([0, 1, 2, 3, 4, 5, 6, 7, 1, 2, 3, 4, 5, 6, 7, 0, 4, 6, 0, 2], dtype=jnp.int32)
    n_edges = src.shape[0]

    node_x = jax.random.normal(ks[0], (BATCH, N_NODES, N_NODE_FEATS), jnp.float32)
    edge_x = jax.random.normal(ks[1], (BATCH, n_edges, N_EDGE_FEATS), jnp.float32)

    mask1 = jnp.zeros((N_NODES, N_NODES), jnp.float32).at[dst, src].set(1.0)
    mask = jnp.tile(mask1[None], (BATCH, 1, 1))
    edge3d = jnp.zeros((BATCH, N_NODES, N_NODES, N_EDGE_FEATS), jnp.float32).at[:, dst, src, :].set(edge_x)

    s = 0.3
    raw = dict(
        w1=s * jax.random.normal(ks[2], (N_NODE_FEATS, HD), jnp.float32),
        we1=s * jax.random.normal(ks[3], (N_EDGE_FEATS, HD), jnp.float32),
        al1=s * jax.random.normal(ks[4], (NUM_HEADS, HIDDEN), jnp.float32),
        ar1=s * jax.random.normal(ks[5], (NUM_HEADS, HIDDEN), jnp.float32),
        ae1=s * jax.random.normal(ks[6], (NUM_HEADS, HIDDEN), jnp.float32),
        wr1=s * jax.random.normal(ks[7], (N_NODE_FEATS, HD), jnp.float32),
        b1=s * jax.random.normal(ks[8], (NUM_HEADS, HIDDEN), jnp.float32),
        w2=s * jax.random.normal(ks[9], (HD, HIDDEN), jnp.float32),
        we2=s * jax.random.normal(ks[10], (N_EDGE_FEATS, HIDDEN), jnp.float32),
        al2=s * jax.random.normal(ks[11], (1, HIDDEN), jnp.float32),
        ar2=s * jax.random.normal(ks[12], (1, HIDDEN), jnp.float32),
        ae2=s * jax.random.normal(ks[13], (1, HIDDEN), jnp.float32),
        wr2=s * jax.random.normal(ks[14], (HD, HIDDEN), jnp.float32),
        b2=s * jax.random.normal(ks[15], (1, HIDDEN), jnp.float32),
        ws=s * jax.random.normal(ks[16], (HIDDEN, NUM_CLASSES), jnp.float32),
        wn=s * jax.random.normal(ks[17], (HIDDEN, NUM_CLASSES), jnp.float32),
        b3=s * jax.random.normal(ks[18], (1, NUM_CLASSES), jnp.float32),
    )

    assert BATCH % GRAPHS_PER_STEP == 0
    data_slab = pack_data(node_x, edge3d, mask)          # (B, 120, 8)
    param_slab = pack_params(fold_params(raw))           # (400, 136)

    out = jax.block_until_ready(model_forward(data_slab, param_slab))
    out = out.reshape(BATCH, N_NODES, NUM_CLASSES)

    ref = jax.vmap(lambda xx, ee, mm: _ref_forward(xx, ee, mm, raw))(node_x, edge3d, mask)
    assert out.shape == (BATCH, N_NODES, NUM_CLASSES)
    assert bool(jnp.allclose(out, ref, atol=1e-4, rtol=1e-4))
    print("KERNEL_OK")
</pallas_src>

<mosaic_0001>
module attributes {stable_mosaic.version = 11 : i64} {
  func.func @_model_kernel(%arg0: i32, %arg1: memref<2x120x8xf32, #tpu.memory_space<vmem>>, %arg2: memref<400x136xf32, #tpu.memory_space<vmem>>, %arg3: memref<16x4xf32, #tpu.memory_space<vmem>>) attributes {dimension_semantics = [#tpu.dimension_semantics<parallel>], iteration_bounds = array<i64: 2>, scalar_prefetch = 0 : i64, scratch_operands = 0 : i64, tpu.core_type = #tpu.core_type<tc>, window_params = [{transform_indices = @transform_0, window_bounds = array<i64: 2, 120, 8>}, {pipeline_mode = #tpu.pipeline_mode<synchronous>, transform_indices = @transform_1, window_bounds = array<i64: 400, 136>}, {transform_indices = @transform_2, window_bounds = array<i64: 16, 4>}]} {
    %c0 = arith.constant 0 : index
    %c0_0 = arith.constant 0 : index
    %0 = vector.load %arg2[%c0, %c0_0] : memref<400x136xf32, #tpu.memory_space<vmem>>, vector<8x136xf32>
    %c8 = arith.constant 8 : index
    %c0_1 = arith.constant 0 : index
    %1 = vector.load %arg2[%c8, %c0_1] : memref<400x136xf32, #tpu.memory_space<vmem>>, vector<64x40xf32>
    %c72 = arith.constant 72 : index
    %c0_2 = arith.constant 0 : index
    %2 = vector.load %arg2[%c72, %c0_2] : memref<400x136xf32, #tpu.memory_space<vmem>>, vector<64x8xf32>
    %c136 = arith.constant 136 : index
    %c0_3 = arith.constant 0 : index
    %3 = vector.load %arg2[%c136, %c0_3] : memref<400x136xf32, #tpu.memory_space<vmem>>, vector<8x64xf32>
    %c144 = arith.constant 144 : index
    %c0_4 = arith.constant 0 : index
    %4 = vector.load %arg2[%c144, %c0_4] : memref<400x136xf32, #tpu.memory_space<vmem>>, vector<1x64xf32>
    %c152 = arith.constant 152 : index
    %c0_5 = arith.constant 0 : index
    %5 = vector.load %arg2[%c152, %c0_5] : memref<400x136xf32, #tpu.memory_space<vmem>>, vector<8x64xf32>
    %c160 = arith.constant 160 : index
    %c0_6 = arith.constant 0 : index
    %6 = vector.load %arg2[%c160, %c0_6] : memref<400x136xf32, #tpu.memory_space<vmem>>, vector<64x64xf32>
    %c224 = arith.constant 224 : index
    %c0_7 = arith.constant 0 : index
    %7 = vector.load %arg2[%c224, %c0_7] : memref<400x136xf32, #tpu.memory_space<vmem>>, vector<64x64xf32>
    %c288 = arith.constant 288 : index
    %c0_8 = arith.constant 0 : index
    %8 = vector.load %arg2[%c288, %c0_8] : memref<400x136xf32, #tpu.memory_space<vmem>>, vector<64x18xf32>
    %c352 = arith.constant 352 : index
    %c0_9 = arith.constant 0 : index
    %9 = vector.load %arg2[%c352, %c0_9] : memref<400x136xf32, #tpu.memory_space<vmem>>, vector<8x32xf32>
    %c360 = arith.constant 360 : index
    %c0_10 = arith.constant 0 : index
    %10 = vector.load %arg2[%c360, %c0_10] : memref<400x136xf32, #tpu.memory_space<vmem>>, vector<8x8xf32>
    %c368 = arith.constant 368 : index
    %c0_11 = arith.constant 0 : index
    %11 = vector.load %arg2[%c368, %c0_11] : memref<400x136xf32, #tpu.memory_space<vmem>>, vector<1x8xf32>
    %c376 = arith.constant 376 : index
    %c0_12 = arith.constant 0 : index
    %12 = vector.load %arg2[%c376, %c0_12] : memref<400x136xf32, #tpu.memory_space<vmem>>, vector<8x64xf32>
    %c384 = arith.constant 384 : index
    %c0_13 = arith.constant 0 : index
    %13 = vector.load %arg2[%c384, %c0_13] : memref<400x136xf32, #tpu.memory_space<vmem>>, vector<8x8xf32>
    %c392 = arith.constant 392 : index
    %c0_14 = arith.constant 0 : index
    %14 = vector.load %arg2[%c392, %c0_14] : memref<400x136xf32, #tpu.memory_space<vmem>>, vector<1x4xf32>
    %c0_15 = arith.constant 0 : index
    %c0_16 = arith.constant 0 : index
    %c0_17 = arith.constant 0 : index
    %15 = vector.load %arg1[%c0_15, %c0_16, %c0_17] : memref<2x120x8xf32, #tpu.memory_space<vmem>>, vector<1x8x8xf32>
    %16 = vector.shape_cast %15 : vector<1x8x8xf32> to vector<8x8xf32>
    %c0_18 = arith.constant 0 : index
    %c8_19 = arith.constant 8 : index
    %c0_20 = arith.constant 0 : index
    %17 = vector.load %arg1[%c0_18, %c8_19, %c0_20] : memref<2x120x8xf32, #tpu.memory_space<vmem>>, vector<1x8x8xf32>
    %18 = vector.shape_cast %17 : vector<1x8x8xf32> to vector<8x8xf32>
    %c0_21 = arith.constant 0 : index
    %c16 = arith.constant 16 : index
    %c0_22 = arith.constant 0 : index
    %19 = vector.load %arg1[%c0_21, %c16, %c0_22] : memref<2x120x8xf32, #tpu.memory_space<vmem>>, vector<1x40x8xf32>
    %20 = vector.shape_cast %19 : vector<1x40x8xf32> to vector<40x8xf32>
    %c0_23 = arith.constant 0 : index
    %c24 = arith.constant 24 : index
    %c0_24 = arith.constant 0 : index
    %21 = vector.load %arg1[%c0_23, %c24, %c0_24] : memref<2x120x8xf32, #tpu.memory_space<vmem>>, vector<1x32x8xf32>
    %22 = vector.shape_cast %21 : vector<1x32x8xf32> to vector<32x8xf32>
    %c0_25 = arith.constant 0 : index
    %c56 = arith.constant 56 : index
    %c0_26 = arith.constant 0 : index
    %23 = vector.load %arg1[%c0_25, %c56, %c0_26] : memref<2x120x8xf32, #tpu.memory_space<vmem>>, vector<1x64x8xf32>
    %24 = vector.shape_cast %23 : vector<1x64x8xf32> to vector<64x8xf32>
    %cst = arith.constant dense<0.000000e+00> : vector<8x136xf32>
    %25 = tpu.matmul %18, %0, %cst {dimension_numbers = #tpu.dot_dimension_numbers<[1], [0], [0], [1], [0, 0, 1, 1], [], []>} : vector<8x8xf32>, vector<8x136xf32>, vector<8x136xf32> -> vector<8x136xf32>
    %26 = vector.extract_strided_slice %25 {offsets = [0, 0], sizes = [8, 64], strides = [1, 1]} : vector<8x136xf32> to vector<8x64xf32>
    %27 = vector.extract_strided_slice %25 {offsets = [0, 64], sizes = [8, 64], strides = [1, 1]} : vector<8x136xf32> to vector<8x64xf32>
    %28 = vector.extract_strided_slice %25 {offsets = [0, 128], sizes = [8, 8], strides = [1, 1]} : vector<8x136xf32> to vector<8x8xf32>
    %cst_27 = arith.constant dense<0.000000e+00> : vector<64x8xf32>
    %29 = tpu.matmul %1, %20, %cst_27 {dimension_numbers = #tpu.dot_dimension_numbers<[1], [0], [0], [1], [0, 0, 1, 1], [], []>} : vector<64x40xf32>, vector<40x8xf32>, vector<64x8xf32> -> vector<64x8xf32>
    %30 = tpu.concatenate %28, %28, %28, %28, %28, %28, %28, %28 in 0 : vector<8x8xf32>, vector<8x8xf32>, vector<8x8xf32>, vector<8x8xf32>, vector<8x8xf32>, vector<8x8xf32>, vector<8x8xf32>, vector<8x8xf32> -> vector<64x8xf32>
    %31 = arith.mulf %30, %2 : vector<64x8xf32>
    %cst_28 = arith.constant dense<0.000000e+00> : vector<64xf32>
    %32 = vector.multi_reduction <add>, %31, %cst_28 [1] : vector<64x8xf32> to vector<64xf32>
    %33 = vector.shape_cast %32 : vector<64xf32> to vector<64x1xf32>
    %34 = vector.broadcast %33 : vector<64x1xf32> to vector<64x8xf32>
    %35 = arith.addf %29, %34 : vector<64x8xf32>
    %cst_29 = arith.constant 0.000000e+00 : f32
    %36 = vector.broadcast %cst_29 : f32 to vector<64x8xf32>
    %37 = arith.cmpf oge, %35, %36 : vector<64x8xf32>
    %cst_30 = arith.constant 2.000000e-01 : f32
    %38 = vector.broadcast %cst_30 : f32 to vector<64x8xf32>
    %39 = arith.mulf %38, %35 : vector<64x8xf32>
    %40 = arith.select %37, %35, %39 : vector<64x8xi1>, vector<64x8xf32>
    %41 = tpu.concatenate %16, %16, %16, %16, %16, %16, %16, %16 in 0 : vector<8x8xf32>, vector<8x8xf32>, vector<8x8xf32>, vector<8x8xf32>, vector<8x8xf32>, vector<8x8xf32>, vector<8x8xf32>, vector<8x8xf32> -> vector<64x8xf32>
    %cst_31 = arith.constant 0.000000e+00 : f32
    %42 = vector.broadcast %cst_31 : f32 to vector<64x8xf32>
    %43 = arith.cmpf ogt, %41, %42 : vector<64x8xf32>
    %cst_32 = arith.constant -1.000000e+30 : f32
    %44 = vector.broadcast %cst_32 : f32 to vector<64x8xf32>
    %45 = arith.select %43, %40, %44 : vector<64x8xi1>, vector<64x8xf32>
    %cst_33 = arith.constant dense<0xFF800000> : vector<64xf32>
    %46 = vector.multi_reduction <maximumf>, %45, %cst_33 [1] : vector<64x8xf32> to vector<64xf32>
    %47 = vector.shape_cast %46 : vector<64xf32> to vector<64x1xf32>
    %48 = vector.broadcast %47 : vector<64x1xf32> to vector<64x8xf32>
    %49 = arith.subf %45, %48 : vector<64x8xf32>
    %50 = math.exp %49 : vector<64x8xf32>
    %51 = arith.mulf %50, %41 : vector<64x8xf32>
    %cst_34 = arith.constant dense<0.000000e+00> : vector<64xf32>
    %52 = vector.multi_reduction <add>, %51, %cst_34 [1] : vector<64x8xf32> to vector<64xf32>
    %53 = vector.shape_cast %52 : vector<64xf32> to vector<64x1xf32>
    %54 = tpu.reciprocal %53 : vector<64x1xf32> -> vector<64x1xf32>
    %55 = vector.broadcast %54 : vector<64x1xf32> to vector<64x8xf32>
    %56 = arith.mulf %51, %55 : vector<64x8xf32>
    %57 = tpu.concatenate %26, %26, %26, %26, %26, %26, %26, %26 in 0 : vector<8x64xf32>, vector<8x64xf32>, vector<8x64xf32>, vector<8x64xf32>, vector<8x64xf32>, vector<8x64xf32>, vector<8x64xf32>, vector<8x64xf32> -> vector<64x64xf32>
    %cst_35 = arith.constant dense<0.000000e+00> : vector<64x64xf32>
    %58 = tpu.matmul %24, %3, %cst_35 {dimension_numbers = #tpu.dot_dimension_numbers<[1], [0], [0], [1], [0, 0, 1, 1], [], []>} : vector<64x8xf32>, vector<8x64xf32>, vector<64x64xf32> -> vector<64x64xf32>
    %59 = arith.addf %57, %58 : vector<64x64xf32>
    %cst_36 = arith.constant dense<0.000000e+00> : vector<64x64xf32>
    %60 = tpu.matmul %56, %5, %cst_36 {dimension_numbers = #tpu.dot_dimension_numbers<[1], [0], [0], [1], [0, 0, 1, 1], [], []>} : vector<64x8xf32>, vector<8x64xf32>, vector<64x64xf32> -> vector<64x64xf32>
    %61 = arith.mulf %60, %6 : vector<64x64xf32>
    %cst_37 = arith.constant dense<0.000000e+00> : vector<64x64xf32>
    %62 = tpu.matmul %61, %59, %cst_37 {dimension_numbers = #tpu.dot_dimension_numbers<[1], [0], [0], [1], [0, 0, 1, 1], [], []>} : vector<64x64xf32>, vector<64x64xf32>, vector<64x64xf32> -> vector<64x64xf32>
    %63 = arith.mulf %62, %7 : vector<64x64xf32>
    %64 = vector.extract_strided_slice %63 {offsets = [0, 0], sizes = [8, 64], strides = [1, 1]} : vector<64x64xf32> to vector<8x64xf32>
    %65 = vector.extract_strided_slice %63 {offsets = [8, 0], sizes = [8, 64], strides = [1, 1]} : vector<64x64xf32> to vector<8x64xf32>
    %66 = arith.addf %64, %65 : vector<8x64xf32>
    %67 = vector.extract_strided_slice %63 {offsets = [16, 0], sizes = [8, 64], strides = [1, 1]} : vector<64x64xf32> to vector<8x64xf32>
    %68 = arith.addf %66, %67 : vector<8x64xf32>
    %69 = vector.extract_strided_slice %63 {offsets = [24, 0], sizes = [8, 64], strides = [1, 1]} : vector<64x64xf32> to vector<8x64xf32>
    %70 = arith.addf %68, %69 : vector<8x64xf32>
    %71 = vector.extract_strided_slice %63 {offsets = [32, 0], sizes = [8, 64], strides = [1, 1]} : vector<64x64xf32> to vector<8x64xf32>
    %72 = arith.addf %70, %71 : vector<8x64xf32>
    %73 = vector.extract_strided_slice %63 {offsets = [40, 0], sizes = [8, 64], strides = [1, 1]} : vector<64x64xf32> to vector<8x64xf32>
    %74 = arith.addf %72, %73 : vector<8x64xf32>
    %75 = vector.extract_strided_slice %63 {offsets = [48, 0], sizes = [8, 64], strides = [1, 1]} : vector<64x64xf32> to vector<8x64xf32>
    %76 = arith.addf %74, %75 : vector<8x64xf32>
    %77 = vector.extract_strided_slice %63 {offsets = [56, 0], sizes = [8, 64], strides = [1, 1]} : vector<64x64xf32> to vector<8x64xf32>
    %78 = arith.addf %76, %77 : vector<8x64xf32>
    %79 = arith.addf %78, %27 : vector<8x64xf32>
    %80 = vector.broadcast %4 : vector<1x64xf32> to vector<8x64xf32>
    %81 = arith.addf %79, %80 : vector<8x64xf32>
    %cst_38 = arith.constant 0.000000e+00 : f32
    %82 = vector.broadcast %cst_38 : f32 to vector<8x64xf32>
    %83 = arith.maximumf %81, %82 : vector<8x64xf32>
    %cst_39 = arith.constant dense<0.000000e+00> : vector<8x18xf32>
    %84 = tpu.matmul %83, %8, %cst_39 {dimension_numbers = #tpu.dot_dimension_numbers<[1], [0], [0], [1], [0, 0, 1, 1], [], []>} : vector<8x64xf32>, vector<64x18xf32>, vector<8x18xf32> -> vector<8x18xf32>
    %85 = vector.extract_strided_slice %84 {offsets = [0, 0], sizes = [8, 8], strides = [1, 1]} : vector<8x18xf32> to vector<8x8xf32>
    %86 = vector.extract_strided_slice %84 {offsets = [0, 8], sizes = [8, 8], strides = [1, 1]} : vector<8x18xf32> to vector<8x8xf32>
    %87 = vector.extract_strided_slice %84 {offsets = [0, 16], sizes = [8, 1], strides = [1, 1]} : vector<8x18xf32> to vector<8x1xf32>
    %88 = vector.extract_strided_slice %84 {offsets = [0, 17], sizes = [8, 1], strides = [1, 1]} : vector<8x18xf32> to vector<8x1xf32>
    %89 = tpu.transpose %87, [1, 0] : vector<8x1xf32> -> vector<1x8xf32>
    %90 = vector.broadcast %89 : vector<1x8xf32> to vector<8x8xf32>
    %91 = vector.broadcast %88 : vector<8x1xf32> to vector<8x8xf32>
    %92 = arith.addf %90, %91 : vector<8x8xf32>
    %cst_40 = arith.constant dense<0.000000e+00> : vector<8x8xf32>
    %93 = tpu.matmul %9, %22, %cst_40 {dimension_numbers = #tpu.dot_dimension_numbers<[1], [0], [0], [1], [0, 0, 1, 1], [], []>} : vector<8x32xf32>, vector<32x8xf32>, vector<8x8xf32> -> vector<8x8xf32>
    %94 = arith.addf %92, %93 : vector<8x8xf32>
    %cst_41 = arith.constant 0.000000e+00 : f32
    %95 = vector.broadcast %cst_41 : f32 to vector<8x8xf32>
    %96 = arith.cmpf oge, %94, %95 : vector<8x8xf32>
    %cst_42 = arith.constant 2.000000e-01 : f32
    %97 = vector.broadcast %cst_42 : f32 to vector<8x8xf32>
    %98 = arith.mulf %97, %94 : vector<8x8xf32>
    %99 = arith.select %96, %94, %98 : vector<8x8xi1>, vector<8x8xf32>
    %cst_43 = arith.constant 0.000000e+00 : f32
    %100 = vector.broadcast %cst_43 : f32 to vector<8x8xf32>
    %101 = arith.cmpf ogt, %16, %100 : vector<8x8xf32>
    %cst_44 = arith.constant -1.000000e+30 : f32
    %102 = vector.broadcast %cst_44 : f32 to vector<8x8xf32>
    %103 = arith.select %101, %99, %102 : vector<8x8xi1>, vector<8x8xf32>
    %cst_45 = arith.constant dense<0xFF800000> : vector<8xf32>
    %104 = vector.multi_reduction <maximumf>, %103, %cst_45 [1] : vector<8x8xf32> to vector<8xf32>
    %105 = vector.shape_cast %104 : vector<8xf32> to vector<8x1xf32>
    %106 = vector.broadcast %105 : vector<8x1xf32> to vector<8x8xf32>
    %107 = arith.subf %103, %106 : vector<8x8xf32>
    %108 = math.exp %107 : vector<8x8xf32>
    %109 = arith.mulf %108, %16 : vector<8x8xf32>
    %cst_46 = arith.constant dense<0.000000e+00> : vector<8xf32>
    %110 = vector.multi_reduction <add>, %109, %cst_46 [1] : vector<8x8xf32> to vector<8xf32>
    %111 = vector.shape_cast %110 : vector<8xf32> to vector<8x1xf32>
    %112 = tpu.reciprocal %111 : vector<8x1xf32> -> vector<8x1xf32>
    %113 = vector.broadcast %112 : vector<8x1xf32> to vector<8x8xf32>
    %114 = arith.mulf %109, %113 : vector<8x8xf32>
    %115 = tpu.concatenate %85, %85, %85, %85, %85, %85, %85, %85 in 0 : vector<8x8xf32>, vector<8x8xf32>, vector<8x8xf32>, vector<8x8xf32>, vector<8x8xf32>, vector<8x8xf32>, vector<8x8xf32>, vector<8x8xf32> -> vector<64x8xf32>
    %cst_47 = arith.constant dense<0.000000e+00> : vector<64x8xf32>
    %116 = tpu.matmul %24, %10, %cst_47 {dimension_numbers = #tpu.dot_dimension_numbers<[1], [0], [0], [1], [0, 0, 1, 1], [], []>} : vector<64x8xf32>, vector<8x8xf32>, vector<64x8xf32> -> vector<64x8xf32>
    %117 = arith.addf %115, %116 : vector<64x8xf32>
    %cst_48 = arith.constant dense<0.000000e+00> : vector<8x64xf32>
    %118 = tpu.matmul %114, %5, %cst_48 {dimension_numbers = #tpu.dot_dimension_numbers<[1], [0], [0], [1], [0, 0, 1, 1], [], []>} : vector<8x8xf32>, vector<8x64xf32>, vector<8x64xf32> -> vector<8x64xf32>
    %119 = arith.mulf %118, %12 : vector<8x64xf32>
    %cst_49 = arith.constant dense<0.000000e+00> : vector<8x8xf32>
    %120 = tpu.matmul %119, %117, %cst_49 {dimension_numbers = #tpu.dot_dimension_numbers<[1], [0], [0], [1], [0, 0, 1, 1], [], []>} : vector<8x64xf32>, vector<64x8xf32>, vector<8x8xf32> -> vector<8x8xf32>
    %121 = arith.addf %120, %86 : vector<8x8xf32>
    %122 = vector.broadcast %11 : vector<1x8xf32> to vector<8x8xf32>
    %123 = arith.addf %121, %122 : vector<8x8xf32>
    %cst_50 = arith.constant 0.000000e+00 : f32
    %124 = vector.broadcast %cst_50 : f32 to vector<8x8xf32>
    %125 = arith.maximumf %123, %124 : vector<8x8xf32>
    %cst_51 = arith.constant dense<0.000000e+00> : vector<8xf32>
    %126 = vector.multi_reduction <add>, %16, %cst_51 [1] : vector<8x8xf32> to vector<8xf32>
    %127 = vector.shape_cast %126 : vector<8xf32> to vector<8x1xf32>
    %cst_52 = arith.constant 1.000000e+00 : f32
    %128 = vector.broadcast %cst_52 : f32 to vector<8x1xf32>
    %129 = arith.maximumf %127, %128 : vector<8x1xf32>
    %cst_53 = arith.constant dense<0.000000e+00> : vector<8x8xf32>
    %130 = tpu.matmul %125, %13, %cst_53 {dimension_numbers = #tpu.dot_dimension_numbers<[1], [0], [0], [1], [0, 0, 1, 1], [], []>} : vector<8x8xf32>, vector<8x8xf32>, vector<8x8xf32> -> vector<8x8xf32>
    %131 = vector.extract_strided_slice %130 {offsets = [0, 0], sizes = [8, 4], strides = [1, 1]} : vector<8x8xf32> to vector<8x4xf32>
    %132 = vector.extract_strided_slice %130 {offsets = [0, 4], sizes = [8, 4], strides = [1, 1]} : vector<8x8xf32> to vector<8x4xf32>
    %cst_54 = arith.constant dense<0.000000e+00> : vector<8x4xf32>
    %133 = tpu.matmul %16, %132, %cst_54 {dimension_numbers = #tpu.dot_dimension_numbers<[1], [0], [0], [1], [0, 0, 1, 1], [], []>} : vector<8x8xf32>, vector<8x4xf32>, vector<8x4xf32> -> vector<8x4xf32>
    %134 = tpu.reciprocal %129 : vector<8x1xf32> -> vector<8x1xf32>
    %135 = vector.broadcast %134 : vector<8x1xf32> to vector<8x4xf32>
    %136 = arith.mulf %133, %135 : vector<8x4xf32>
    %137 = arith.addf %131, %136 : vector<8x4xf32>
    %138 = vector.broadcast %14 : vector<1x4xf32> to vector<8x4xf32>
    %139 = arith.addf %137, %138 : vector<8x4xf32>
    %cst_55 = arith.constant dense<0xFF800000> : vector<8xf32>
    %140 = vector.multi_reduction <maximumf>, %139, %cst_55 [1] : vector<8x4xf32> to vector<8xf32>
    %141 = vector.shape_cast %140 : vector<8xf32> to vector<8x1xf32>
    %142 = vector.broadcast %141 : vector<8x1xf32> to vector<8x4xf32>
    %143 = arith.subf %139, %142 : vector<8x4xf32>
    %144 = math.exp %143 : vector<8x4xf32>
    %cst_56 = arith.constant dense<0.000000e+00> : vector<8xf32>
    %145 = vector.multi_reduction <add>, %144, %cst_56 [1] : vector<8x4xf32> to vector<8xf32>
    %146 = vector.shape_cast %145 : vector<8xf32> to vector<8x1xf32>
    %147 = tpu.reciprocal %146 : vector<8x1xf32> -> vector<8x1xf32>
    %148 = vector.broadcast %147 : vector<8x1xf32> to vector<8x4xf32>
    %149 = arith.mulf %144, %148 : vector<8x4xf32>
    %c0_57 = arith.constant 0 : index
    %c0_58 = arith.constant 0 : index
    %150 = vector.load %arg3[%c0_57, %c0_58] : memref<16x4xf32, #tpu.memory_space<vmem>>, vector<8x4xf32>
    tpu.vector_store %arg3[%c0_57, %c0_58], %149 {strides = array<i32>} : memref<16x4xf32, #tpu.memory_space<vmem>>, vector<8x4xf32>,
    %c1 = arith.constant 1 : index
    %c0_59 = arith.constant 0 : index
    %c0_60 = arith.constant 0 : index
    %151 = vector.load %arg1[%c1, %c0_59, %c0_60] : memref<2x120x8xf32, #tpu.memory_space<vmem>>, vector<1x8x8xf32>
    %152 = vector.shape_cast %151 : vector<1x8x8xf32> to vector<8x8xf32>
    %c1_61 = arith.constant 1 : index
    %c8_62 = arith.constant 8 : index
    %c0_63 = arith.constant 0 : index
    %153 = vector.load %arg1[%c1_61, %c8_62, %c0_63] : memref<2x120x8xf32, #tpu.memory_space<vmem>>, vector<1x8x8xf32>
    %154 = vector.shape_cast %153 : vector<1x8x8xf32> to vector<8x8xf32>
    %c1_64 = arith.constant 1 : index
    %c16_65 = arith.constant 16 : index
    %c0_66 = arith.constant 0 : index
    %155 = vector.load %arg1[%c1_64, %c16_65, %c0_66] : memref<2x120x8xf32, #tpu.memory_space<vmem>>, vector<1x40x8xf32>
    %156 = vector.shape_cast %155 : vector<1x40x8xf32> to vector<40x8xf32>
    %c1_67 = arith.constant 1 : index
    %c24_68 = arith.constant 24 : index
    %c0_69 = arith.constant 0 : index
    %157 = vector.load %arg1[%c1_67, %c24_68, %c0_69] : memref<2x120x8xf32, #tpu.memory_space<vmem>>, vector<1x32x8xf32>
    %158 = vector.shape_cast %157 : vector<1x32x8xf32> to vector<32x8xf32>
    %c1_70 = arith.constant 1 : index
    %c56_71 = arith.constant 56 : index
    %c0_72 = arith.constant 0 : index
    %159 = vector.load %arg1[%c1_70, %c56_71, %c0_72] : memref<2x120x8xf32, #tpu.memory_space<vmem>>, vector<1x64x8xf32>
    %160 = vector.shape_cast %159 : vector<1x64x8xf32> to vector<64x8xf32>
    %cst_73 = arith.constant dense<0.000000e+00> : vector<8x136xf32>
    %161 = tpu.matmul %154, %0, %cst_73 {dimension_numbers = #tpu.dot_dimension_numbers<[1], [0], [0], [1], [0, 0, 1, 1], [], []>} : vector<8x8xf32>, vector<8x136xf32>, vector<8x136xf32> -> vector<8x136xf32>
    %162 = vector.extract_strided_slice %161 {offsets = [0, 0], sizes = [8, 64], strides = [1, 1]} : vector<8x136xf32> to vector<8x64xf32>
    %163 = vector.extract_strided_slice %161 {offsets = [0, 64], sizes = [8, 64], strides = [1, 1]} : vector<8x136xf32> to vector<8x64xf32>
    %164 = vector.extract_strided_slice %161 {offsets = [0, 128], sizes = [8, 8], strides = [1, 1]} : vector<8x136xf32> to vector<8x8xf32>
    %cst_74 = arith.constant dense<0.000000e+00> : vector<64x8xf32>
    %165 = tpu.matmul %1, %156, %cst_74 {dimension_numbers = #tpu.dot_dimension_numbers<[1], [0], [0], [1], [0, 0, 1, 1], [], []>} : vector<64x40xf32>, vector<40x8xf32>, vector<64x8xf32> -> vector<64x8xf32>
    %166 = tpu.concatenate %164, %164, %164, %164, %164, %164, %164, %164 in 0 : vector<8x8xf32>, vector<8x8xf32>, vector<8x8xf32>, vector<8x8xf32>, vector<8x8xf32>, vector<8x8xf32>, vector<8x8xf32>, vector<8x8xf32> -> vector<64x8xf32>
    %167 = arith.mulf %166, %2 : vector<64x8xf32>
    %cst_75 = arith.constant dense<0.000000e+00> : vector<64xf32>
    %168 = vector.multi_reduction <add>, %167, %cst_75 [1] : vector<64x8xf32> to vector<64xf32>
    %169 = vector.shape_cast %168 : vector<64xf32> to vector<64x1xf32>
    %170 = vector.broadcast %169 : vector<64x1xf32> to vector<64x8xf32>
    %171 = arith.addf %165, %170 : vector<64x8xf32>
    %cst_76 = arith.constant 0.000000e+00 : f32
    %172 = vector.broadcast %cst_76 : f32 to vector<64x8xf32>
    %173 = arith.cmpf oge, %171, %172 : vector<64x8xf32>
    %cst_77 = arith.constant 2.000000e-01 : f32
    %174 = vector.broadcast %cst_77 : f32 to vector<64x8xf32>
    %175 = arith.mulf %174, %171 : vector<64x8xf32>
    %176 = arith.select %173, %171, %175 : vector<64x8xi1>, vector<64x8xf32>
    %177 = tpu.concatenate %152, %152, %152, %152, %152, %152, %152, %152 in 0 : vector<8x8xf32>, vector<8x8xf32>, vector<8x8xf32>, vector<8x8xf32>, vector<8x8xf32>, vector<8x8xf32>, vector<8x8xf32>, vector<8x8xf32> -> vector<64x8xf32>
    %cst_78 = arith.constant 0.000000e+00 : f32
    %178 = vector.broadcast %cst_78 : f32 to vector<64x8xf32>
    %179 = arith.cmpf ogt, %177, %178 : vector<64x8xf32>
    %cst_79 = arith.constant -1.000000e+30 : f32
    %180 = vector.broadcast %cst_79 : f32 to vector<64x8xf32>
    %181 = arith.select %179, %176, %180 : vector<64x8xi1>, vector<64x8xf32>
    %cst_80 = arith.constant dense<0xFF800000> : vector<64xf32>
    %182 = vector.multi_reduction <maximumf>, %181, %cst_80 [1] : vector<64x8xf32> to vector<64xf32>
    %183 = vector.shape_cast %182 : vector<64xf32> to vector<64x1xf32>
    %184 = vector.broadcast %183 : vector<64x1xf32> to vector<64x8xf32>
    %185 = arith.subf %181, %184 : vector<64x8xf32>
    %186 = math.exp %185 : vector<64x8xf32>
    %187 = arith.mulf %186, %177 : vector<64x8xf32>
    %cst_81 = arith.constant dense<0.000000e+00> : vector<64xf32>
    %188 = vector.multi_reduction <add>, %187, %cst_81 [1] : vector<64x8xf32> to vector<64xf32>
    %189 = vector.shape_cast %188 : vector<64xf32> to vector<64x1xf32>
    %190 = tpu.reciprocal %189 : vector<64x1xf32> -> vector<64x1xf32>
    %191 = vector.broadcast %190 : vector<64x1xf32> to vector<64x8xf32>
    %192 = arith.mulf %187, %191 : vector<64x8xf32>
    %193 = tpu.concatenate %162, %162, %162, %162, %162, %162, %162, %162 in 0 : vector<8x64xf32>, vector<8x64xf32>, vector<8x64xf32>, vector<8x64xf32>, vector<8x64xf32>, vector<8x64xf32>, vector<8x64xf32>, vector<8x64xf32> -> vector<64x64xf32>
    %cst_82 = arith.constant dense<0.000000e+00> : vector<64x64xf32>
    %194 = tpu.matmul %160, %3, %cst_82 {dimension_numbers = #tpu.dot_dimension_numbers<[1], [0], [0], [1], [0, 0, 1, 1], [], []>} : vector<64x8xf32>, vector<8x64xf32>, vector<64x64xf32> -> vector<64x64xf32>
    %195 = arith.addf %193, %194 : vector<64x64xf32>
    %cst_83 = arith.constant dense<0.000000e+00> : vector<64x64xf32>
    %196 = tpu.matmul %192, %5, %cst_83 {dimension_numbers = #tpu.dot_dimension_numbers<[1], [0], [0], [1], [0, 0, 1, 1], [], []>} : vector<64x8xf32>, vector<8x64xf32>, vector<64x64xf32> -> vector<64x64xf32>
    %197 = arith.mulf %196, %6 : vector<64x64xf32>
    %cst_84 = arith.constant dense<0.000000e+00> : vector<64x64xf32>
    %198 = tpu.matmul %197, %195, %cst_84 {dimension_numbers = #tpu.dot_dimension_numbers<[1], [0], [0], [1], [0, 0, 1, 1], [], []>} : vector<64x64xf32>, vector<64x64xf32>, vector<64x64xf32> -> vector<64x64xf32>
    %199 = arith.mulf %198, %7 : vector<64x64xf32>
    %200 = vector.extract_strided_slice %199 {offsets = [0, 0], sizes = [8, 64], strides = [1, 1]} : vector<64x64xf32> to vector<8x64xf32>
    %201 = vector.extract_strided_slice %199 {offsets = [8, 0], sizes = [8, 64], strides = [1, 1]} : vector<64x64xf32> to vector<8x64xf32>
    %202 = arith.addf %200, %201 : vector<8x64xf32>
    %203 = vector.extract_strided_slice %199 {offsets = [16, 0], sizes = [8, 64], strides = [1, 1]} : vector<64x64xf32> to vector<8x64xf32>
    %204 = arith.addf %202, %203 : vector<8x64xf32>
    %205 = vector.extract_strided_slice %199 {offsets = [24, 0], sizes = [8, 64], strides = [1, 1]} : vector<64x64xf32> to vector<8x64xf32>
    %206 = arith.addf %204, %205 : vector<8x64xf32>
    %207 = vector.extract_strided_slice %199 {offsets = [32, 0], sizes = [8, 64], strides = [1, 1]} : vector<64x64xf32> to vector<8x64xf32>
    %208 = arith.addf %206, %207 : vector<8x64xf32>
    %209 = vector.extract_strided_slice %199 {offsets = [40, 0], sizes = [8, 64], strides = [1, 1]} : vector<64x64xf32> to vector<8x64xf32>
    %210 = arith.addf %208, %209 : vector<8x64xf32>
    %211 = vector.extract_strided_slice %199 {offsets = [48, 0], sizes = [8, 64], strides = [1, 1]} : vector<64x64xf32> to vector<8x64xf32>
    %212 = arith.addf %210, %211 : vector<8x64xf32>
    %213 = vector.extract_strided_slice %199 {offsets = [56, 0], sizes = [8, 64], strides = [1, 1]} : vector<64x64xf32> to vector<8x64xf32>
    %214 = arith.addf %212, %213 : vector<8x64xf32>
    %215 = arith.addf %214, %163 : vector<8x64xf32>
    %216 = vector.broadcast %4 : vector<1x64xf32> to vector<8x64xf32>
    %217 = arith.addf %215, %216 : vector<8x64xf32>
    %cst_85 = arith.constant 0.000000e+00 : f32
    %218 = vector.broadcast %cst_85 : f32 to vector<8x64xf32>
    %219 = arith.maximumf %217, %218 : vector<8x64xf32>
    %cst_86 = arith.constant dense<0.000000e+00> : vector<8x18xf32>
    %220 = tpu.matmul %219, %8, %cst_86 {dimension_numbers = #tpu.dot_dimension_numbers<[1], [0], [0], [1], [0, 0, 1, 1], [], []>} : vector<8x64xf32>, vector<64x18xf32>, vector<8x18xf32> -> vector<8x18xf32>
    %221 = vector.extract_strided_slice %220 {offsets = [0, 0], sizes = [8, 8], strides = [1, 1]} : vector<8x18xf32> to vector<8x8xf32>
    %222 = vector.extract_strided_slice %220 {offsets = [0, 8], sizes = [8, 8], strides = [1, 1]} : vector<8x18xf32> to vector<8x8xf32>
    %223 = vector.extract_strided_slice %220 {offsets = [0, 16], sizes = [8, 1], strides = [1, 1]} : vector<8x18xf32> to vector<8x1xf32>
    %224 = vector.extract_strided_slice %220 {offsets = [0, 17], sizes = [8, 1], strides = [1, 1]} : vector<8x18xf32> to vector<8x1xf32>
    %225 = tpu.transpose %223, [1, 0] : vector<8x1xf32> -> vector<1x8xf32>
    %226 = vector.broadcast %225 : vector<1x8xf32> to vector<8x8xf32>
    %227 = vector.broadcast %224 : vector<8x1xf32> to vector<8x8xf32>
    %228 = arith.addf %226, %227 : vector<8x8xf32>
    %cst_87 = arith.constant dense<0.000000e+00> : vector<8x8xf32>
    %229 = tpu.matmul %9, %158, %cst_87 {dimension_numbers = #tpu.dot_dimension_numbers<[1], [0], [0], [1], [0, 0, 1, 1], [], []>} : vector<8x32xf32>, vector<32x8xf32>, vector<8x8xf32> -> vector<8x8xf32>
    %230 = arith.addf %228, %229 : vector<8x8xf32>
    %cst_88 = arith.constant 0.000000e+00 : f32
    %231 = vector.broadcast %cst_88 : f32 to vector<8x8xf32>
    %232 = arith.cmpf oge, %230, %231 : vector<8x8xf32>
    %cst_89 = arith.constant 2.000000e-01 : f32
    %233 = vector.broadcast %cst_89 : f32 to vector<8x8xf32>
    %234 = arith.mulf %233, %230 : vector<8x8xf32>
    %235 = arith.select %232, %230, %234 : vector<8x8xi1>, vector<8x8xf32>
    %cst_90 = arith.constant 0.000000e+00 : f32
    %236 = vector.broadcast %cst_90 : f32 to vector<8x8xf32>
    %237 = arith.cmpf ogt, %152, %236 : vector<8x8xf32>
    %cst_91 = arith.constant -1.000000e+30 : f32
    %238 = vector.broadcast %cst_91 : f32 to vector<8x8xf32>
    %239 = arith.select %237, %235, %238 : vector<8x8xi1>, vector<8x8xf32>
    %cst_92 = arith.constant dense<0xFF800000> : vector<8xf32>
    %240 = vector.multi_reduction <maximumf>, %239, %cst_92 [1] : vector<8x8xf32> to vector<8xf32>
    %241 = vector.shape_cast %240 : vector<8xf32> to vector<8x1xf32>
    %242 = vector.broadcast %241 : vector<8x1xf32> to vector<8x8xf32>
    %243 = arith.subf %239, %242 : vector<8x8xf32>
    %244 = math.exp %243 : vector<8x8xf32>
    %245 = arith.mulf %244, %152 : vector<8x8xf32>
    %cst_93 = arith.constant dense<0.000000e+00> : vector<8xf32>
    %246 = vector.multi_reduction <add>, %245, %cst_93 [1] : vector<8x8xf32> to vector<8xf32>
    %247 = vector.shape_cast %246 : vector<8xf32> to vector<8x1xf32>
    %248 = tpu.reciprocal %247 : vector<8x1xf32> -> vector<8x1xf32>
    %249 = vector.broadcast %248 : vector<8x1xf32> to vector<8x8xf32>
    %250 = arith.mulf %245, %249 : vector<8x8xf32>
    %251 = tpu.concatenate %221, %221, %221, %221, %221, %221, %221, %221 in 0 : vector<8x8xf32>, vector<8x8xf32>, vector<8x8xf32>, vector<8x8xf32>, vector<8x8xf32>, vector<8x8xf32>, vector<8x8xf32>, vector<8x8xf32> -> vector<64x8xf32>
    %cst_94 = arith.constant dense<0.000000e+00> : vector<64x8xf32>
    %252 = tpu.matmul %160, %10, %cst_94 {dimension_numbers = #tpu.dot_dimension_numbers<[1], [0], [0], [1], [0, 0, 1, 1], [], []>} : vector<64x8xf32>, vector<8x8xf32>, vector<64x8xf32> -> vector<64x8xf32>
    %253 = arith.addf %251, %252 : vector<64x8xf32>
    %cst_95 = arith.constant dense<0.000000e+00> : vector<8x64xf32>
    %254 = tpu.matmul %250, %5, %cst_95 {dimension_numbers = #tpu.dot_dimension_numbers<[1], [0], [0], [1], [0, 0, 1, 1], [], []>} : vector<8x8xf32>, vector<8x64xf32>, vector<8x64xf32> -> vector<8x64xf32>
    %255 = arith.mulf %254, %12 : vector<8x64xf32>
    %cst_96 = arith.constant dense<0.000000e+00> : vector<8x8xf32>
    %256 = tpu.matmul %255, %253, %cst_96 {dimension_numbers = #tpu.dot_dimension_numbers<[1], [0], [0], [1], [0, 0, 1, 1], [], []>} : vector<8x64xf32>, vector<64x8xf32>, vector<8x8xf32> -> vector<8x8xf32>
    %257 = arith.addf %256, %222 : vector<8x8xf32>
    %258 = vector.broadcast %11 : vector<1x8xf32> to vector<8x8xf32>
    %259 = arith.addf %257, %258 : vector<8x8xf32>
    %cst_97 = arith.constant 0.000000e+00 : f32
    %260 = vector.broadcast %cst_97 : f32 to vector<8x8xf32>
    %261 = arith.maximumf %259, %260 : vector<8x8xf32>
    %cst_98 = arith.constant dense<0.000000e+00> : vector<8xf32>
    %262 = vector.multi_reduction <add>, %152, %cst_98 [1] : vector<8x8xf32> to vector<8xf32>
    %263 = vector.shape_cast %262 : vector<8xf32> to vector<8x1xf32>
    %cst_99 = arith.constant 1.000000e+00 : f32
    %264 = vector.broadcast %cst_99 : f32 to vector<8x1xf32>
    %265 = arith.maximumf %263, %264 : vector<8x1xf32>
    %cst_100 = arith.constant dense<0.000000e+00> : vector<8x8xf32>
    %266 = tpu.matmul %261, %13, %cst_100 {dimension_numbers = #tpu.dot_dimension_numbers<[1], [0], [0], [1], [0, 0, 1, 1], [], []>} : vector<8x8xf32>, vector<8x8xf32>, vector<8x8xf32> -> vector<8x8xf32>
    %267 = vector.extract_strided_slice %266 {offsets = [0, 0], sizes = [8, 4], strides = [1, 1]} : vector<8x8xf32> to vector<8x4xf32>
    %268 = vector.extract_strided_slice %266 {offsets = [0, 4], sizes = [8, 4], strides = [1, 1]} : vector<8x8xf32> to vector<8x4xf32>
    %cst_101 = arith.constant dense<0.000000e+00> : vector<8x4xf32>
    %269 = tpu.matmul %152, %268, %cst_101 {dimension_numbers = #tpu.dot_dimension_numbers<[1], [0], [0], [1], [0, 0, 1, 1], [], []>} : vector<8x8xf32>, vector<8x4xf32>, vector<8x4xf32> -> vector<8x4xf32>
    %270 = tpu.reciprocal %265 : vector<8x1xf32> -> vector<8x1xf32>
    %271 = vector.broadcast %270 : vector<8x1xf32> to vector<8x4xf32>
    %272 = arith.mulf %269, %271 : vector<8x4xf32>
    %273 = arith.addf %267, %272 : vector<8x4xf32>
    %274 = vector.broadcast %14 : vector<1x4xf32> to vector<8x4xf32>
    %275 = arith.addf %273, %274 : vector<8x4xf32>
    %cst_102 = arith.constant dense<0xFF800000> : vector<8xf32>
    %276 = vector.multi_reduction <maximumf>, %275, %cst_102 [1] : vector<8x4xf32> to vector<8xf32>
    %277 = vector.shape_cast %276 : vector<8xf32> to vector<8x1xf32>
    %278 = vector.broadcast %277 : vector<8x1xf32> to vector<8x4xf32>
    %279 = arith.subf %275, %278 : vector<8x4xf32>
    %280 = math.exp %279 : vector<8x4xf32>
    %cst_103 = arith.constant dense<0.000000e+00> : vector<8xf32>
    %281 = vector.multi_reduction <add>, %280, %cst_103 [1] : vector<8x4xf32> to vector<8xf32>
    %282 = vector.shape_cast %281 : vector<8xf32> to vector<8x1xf32>
    %283 = tpu.reciprocal %282 : vector<8x1xf32> -> vector<8x1xf32>
    %284 = vector.broadcast %283 : vector<8x1xf32> to vector<8x4xf32>
    %285 = arith.mulf %280, %284 : vector<8x4xf32>
    %c8_104 = arith.constant 8 : index
    %c0_105 = arith.constant 0 : index
    %286 = vector.load %arg3[%c8_104, %c0_105] : memref<16x4xf32, #tpu.memory_space<vmem>>, vector<8x4xf32>
    tpu.vector_store %arg3[%c8_104, %c0_105], %285 {strides = array<i32>} : memref<16x4xf32, #tpu.memory_space<vmem>>, vector<8x4xf32>,
    return
  }
  func.func @transform_0(%arg0: i32) -> (i32, i32, i32) {
    %c0_i32 = arith.constant 0 : i32
    %c0_i32_0 = arith.constant 0 : i32
    %c0_i32_1 = arith.constant 0 : i32
    return %arg0, %c0_i32, %c0_i32_0 : i32, i32, i32
  }
  func.func @transform_1(%arg0: i32) -> (i32, i32) {
    %c0_i32 = arith.constant 0 : i32
    %c0_i32_0 = arith.constant 0 : i32
    %c0_i32_1 = arith.constant 0 : i32
    return %c0_i32, %c0_i32_0 : i32, i32
  }
  func.func @transform_2(%arg0: i32) -> (i32, i32) {
    %c0_i32 = arith.constant 0 : i32
    %c0_i32_0 = arith.constant 0 : i32
    return %arg0, %c0_i32 : i32, i32
  }
}

</mosaic_0001>

<llo_original>
// kernel: model_forward.1
$region0: #{model_forward.1}
  #allocation0 [shape = 'u32[]', space=smem, size = 0x4, offset = 0x4, fixed_abs, tag = 'smem constant byte address 0x4 - core index']
  #allocation1 [shape = 'u32[72,128]{1,0:T(1,128)}', space=vmem, size = 0x9000, scoped, tag = 'internal scratch']
  %s0 = inlined_call_operand.vmem [shape: f32[4,120,8], index: 0, kind: input, shape index: {}]
  %s1 = inlined_call_operand.vmem [shape: f32[400,136], index: 1, kind: input, shape index: {}]
  %s2 = inlined_call_operand.vmem [shape: f32[32,4], index: 2, kind: output, shape index: {}]
  %s3 = sld [smem:[#allocation0]]
  $region41: #{model_forward.1} parent=0
    _
  %s5 = ssub.s32 1, %s3
  %s6 = scalar_select 0, %s5, %s3
  loop: start=0, step=1, limit=4
  $region2: #{model_forward.1} parent=0 // loop_pre_header
    _
  $region3: #{model_forward.1} parent=0 // loop_header
    %s8 = sphi 0, %s12
    %p9 = scmp.ge.s32.totalorder %s8, 4
    %s18 = sphi 0, %s20
    %s21 = sphi 0, %s18
    %s22 = sphi 0, %s21
    %s38 = sphi 0, %s22
    %s42 = sphi 0, %s42
    %s44 = sphi 0, %s42
    %s45 = sphi 0, %s44
    %s59 = sphi 0, %s45
    %s65 = sphi 0, %s67
    %s68 = sphi 0, %s65
    %s69 = sphi 0, %s68
    %s85 = sphi 0, %s69
  $region4: #{model_forward.1} parent=0 // loop_header_branch
    %11 = sbr.rel (%p9) target = $region8
  $region5: #{model_forward.1} parent=0 // loop_body
    %s13 = ssub.s32 %s8, 1
    %s14 = ssub.s32 %s8, 2
    %s15 = sadd.s32 %s8, 1
    %s16 = ssub.s32 %s8, %s15
    %p17 = scmp.eq.s32.totalorder %s16, 0
    %s19 = sadd.s32 %s18, 1
    %s20 = scalar_select %p17, %s18, %s19
    %p23 = pneg %p17
    %p24 = scmp.eq.s32.totalorder %s8, 1
    %p25 = por %p23, %p24
    %p26 = scmp.ne.s32.totalorder %s18, %s21
    %p27 = scmp.eq.s32.totalorder %s8, 0
    %p28 = por %p26, %p27
    %p29 = scmp.ne.s32.totalorder %s18, %s21
    %p30 = scmp.eq.s32.totalorder %s13, 1
    %p31 = por %p29, %p30
    %p32 = scmp.ne.s32.totalorder %s21, %s22
    %p33 = scmp.eq.s32.totalorder %s13, 0
    %p34 = por %p32, %p33
    %p35 = scmp.ne.s32.totalorder %s21, %s22
    %p36 = scmp.eq.s32.totalorder %s14, 1
    %p37 = por %p35, %p36
    %p39 = scmp.ne.s32.totalorder %s22, %s38
    %p40 = scmp.eq.s32.totalorder %s14, 0
    %p41 = por %p39, %p40
    %s43 = sadd.s32 %s42, 1
    %p46 = scmp.eq.s32.totalorder %s8, 1
    %p47 = scmp.ne.s32.totalorder %s42, %s44
    %p48 = scmp.eq.s32.totalorder %s8, 0
    %p49 = por %p47, %p48
    %p50 = scmp.ne.s32.totalorder %s42, %s44
    %p51 = scmp.eq.s32.totalorder %s13, 1
    %p52 = por %p50, %p51
    %p53 = scmp.ne.s32.totalorder %s44, %s45
    %p54 = scmp.eq.s32.totalorder %s13, 0
    %p55 = por %p53, %p54
    %p56 = scmp.ne.s32.totalorder %s44, %s45
    %p57 = scmp.eq.s32.totalorder %s14, 1
    %p58 = por %p56, %p57
    %p60 = scmp.ne.s32.totalorder %s45, %s59
    %p61 = scmp.eq.s32.totalorder %s14, 0
    %p62 = por %p60, %p61
    %s63 = ssub.s32 %s8, %s15
    %p64 = scmp.eq.s32.totalorder %s63, 0
    %s66 = sadd.s32 %s65, 1
    %s67 = scalar_select %p64, %s65, %s66
    %p70 = pneg %p64
    %p71 = scmp.eq.s32.totalorder %s8, 1
    %p72 = por %p70, %p71
    %p73 = scmp.ne.s32.totalorder %s65, %s68
    %p74 = scmp.eq.s32.totalorder %s8, 0
    %p75 = por %p73, %p74
    %p76 = scmp.ne.s32.totalorder %s65, %s68
    %p77 = scmp.eq.s32.totalorder %s13, 1
    %p78 = por %p76, %p77
    %p79 = scmp.ne.s32.totalorder %s68, %s69
    %p80 = scmp.eq.s32.totalorder %s13, 0
    %p81 = por %p79, %p80
    %p82 = scmp.ne.s32.totalorder %s68, %s69
    %p83 = scmp.eq.s32.totalorder %s14, 1
    %p84 = por %p82, %p83
    %p86 = scmp.ne.s32.totalorder %s69, %s85
    %p87 = scmp.eq.s32.totalorder %s14, 0
    %p88 = por %p86, %p87
    %p89 = scmp.le.s32.totalorder 1, %s8
    %p90 = scmp.lt.s32.totalorder %s8, 3
    %p91 = pnand %p89, %p90
    %p92 = pneg %p91
    // Predicated region
    $region9: #{model_forward.1} parent=5 // pred_check
      _
    $region10: #{model_forward.1} parent=5 // pred_check_branch
      %94 = sbr.rel (%p91) target = $region12
    $region11: #{model_forward.1} parent=5 // pred_region
      %s95 = ssub.s32 %s8, 1
      // Predicated region
      $region13: #{model_forward.1} parent=11 // pred_check
        %p96 = pneg %p55
      $region14: #{model_forward.1} parent=11 // pred_check_branch
        %98 = sbr.rel (%p96) target = $region16
      $region15: #{model_forward.1} parent=11 // pred_region
        _
      $region16: #{model_forward.1} parent=11 // pred_fallthru
        _
    $region12: #{model_forward.1} parent=5 // pred_fallthru
      _
    %p99 = scmp.lt.s32.totalorder %s8, 2
    // Predicated region
    $region17: #{model_forward.1} parent=5 // pred_check
      %p100 = pneg %p99
    $region18: #{model_forward.1} parent=5 // pred_check_branch
      %102 = sbr.rel (%p100) target = $region20
    $region19: #{model_forward.1} parent=5 // pred_region
      // Predicated region
      $region21: #{model_forward.1} parent=19 // pred_check
        %p103 = pneg %p28
      $region22: #{model_forward.1} parent=19 // pred_check_branch
        %105 = sbr.rel (%p103) target = $region24
      $region23: #{model_forward.1} parent=19 // pred_region
        %s106 = smul.u32 2, %s8
        %p107 = scmp.lt.s32.totalorder %s106, 3
        %s108 = scalar_select %p107, %s106, 3
        %s109 = smul.addr %s108, 15
        %s110 = smul.addr %s109, 8
        %s111 = scalar_lea.vmem %s0, %s110
        %s112 = smul.u32 2, %s8
      $region24: #{model_forward.1} parent=19 // pred_fallthru
        _
    $region20: #{model_forward.1} parent=5 // pred_fallthru
      _
    %p113 = scmp.le.s32.totalorder 1, %s8
    %p114 = scmp.lt.s32.totalorder %s8, 3
    %p115 = pnand %p113, %p114
    %p116 = pneg %p115
    // Predicated region
    $region25: #{model_forward.1} parent=5 // pred_check
      _
    $region26: #{model_forward.1} parent=5 // pred_check_branch
      %118 = sbr.rel (%p115) target = $region28
    $region27: #{model_forward.1} parent=5 // pred_region
      %s119 = ssub.s32 %s8, 1
      %s120 = smul.u32 2, %s13
      %p121 = scmp.lt.s32.totalorder %s120, 3
      %s122 = scalar_select %p121, %s120, 3
      %s123 = smul.addr %s122, 15
      %s124 = smul.addr %s123, 8
      %s125 = scalar_lea.vmem %s0, %s124
      %p126 = pneg %p34
      %p127 = pneg %p31
      %p128 = pneg %p55
      %p129 = pneg %p52
      %p130 = pneg %p81
      %p131 = pneg %p78
      %s132 = smul.u32 2, %s13
      %p133 = scmp.lt.s32.totalorder %s132, 3
      %s134 = scalar_select %p133, %s132, 3
      %s135 = smul.addr %s134, 8
      %s136 = scalar_lea.vmem %s2, %s135
      %s137 = smul.u32 2, %s13
      %p138 = scmp.lt.s32.totalorder %s137, 3
      %s139 = scalar_select %p138, %s137, 3
      %s140 = smul.addr %s139, 15
      %s141 = smul.addr %s140, 8
      %s142 = scalar_lea.vmem %s0, %s141
      %s143 = smul.u32 2, %s13
      %s144 = smul.u32 2, %s13
      %p145 = scmp.lt.s32.totalorder %s144, 3
      %s146 = scalar_select %p145, %s144, 3
      %s147 = smul.addr %s146, 8
      %s148 = scalar_lea.vmem %s2, %s147
      %s149 = smul.u32 2, %s13
      %v150 = vld [vmem:[%s1] sm:$0xff]
      %v151 = vld [vmem:[%s1 + $0x8] sm:$0xff]
      %v152 = vld [vmem:[%s1 + $0x10] sm:$0xff]
      %v153 = vld [vmem:[%s1 + $0x20] sm:$0xff]
      %v154 = vld [vmem:[%s1 + $0x30] sm:$0xff]
      %v155 = vld [vmem:[%s1 + $0x40] sm:$0xff]
      %v156 = vld [vmem:[%s1 + $0x50] sm:$0xff]
      %v157 = vld [vmem:[%s1 + $0x60] sm:$0xff]
      %v158 = vld [vmem:[%s1 + $0x70] sm:$0xff]
      %v159 = vld [vmem:[%s1 + $0x80] sm:$0xff]
      %v160 = vld [vmem:[%s1 + $0x90] sm:$0xff]
      %v161 = vld [vmem:[%s1 + $0xa0] sm:$0xff]
      %v162 = vld [vmem:[%s1 + $0xb0] sm:$0xff]
      %v163 = vld [vmem:[%s1 + $0xc0] sm:$0xff]
      %v164 = vld [vmem:[%s1 + $0xd0] sm:$0xff]
      %v165 = vld [vmem:[%s1 + $0xe0] sm:$0xff]
      %v166 = vld [vmem:[%s1 + $0xf0] sm:$0xff]
      %v167 = vld [vmem:[%s1 + $0x100] sm:$0xff]
      %v168 = vld [vmem:[%s1 + $0x110] sm:$0xff]
      %v169 = vld [vmem:[%s1 + $0x120] ss:$0 sm:$0xff]
      %v170 = vld [vmem:[%s1 + $0x130] sm:$0xff]
      %v171 = vld [vmem:[%s1 + $0x140] sm:$0xff]
      %v172 = vld [vmem:[%s1 + $0x150] sm:$0xff]
      %v173 = vld [vmem:[%s1 + $0x160] sm:$0xff]
      %v174 = vld [vmem:[%s1 + $0x170] sm:$0xff]
      %v175 = vld [vmem:[%s1 + $0x180] sm:$0xff]
      %v176 = vld [vmem:[%s1 + $0x190] sm:$0xff]
      %v177 = vld [vmem:[%s1 + $0x1a0] sm:$0xff]
      %v178 = vld [vmem:[%s1 + $0x1b0] sm:$0xff]
      %v179 = vld [vmem:[%s1 + $0x1c0] sm:$0xff]
      %v180 = vld [vmem:[%s1 + $0x1d0] sm:$0xff]
      %v181 = vld [vmem:[%s1 + $0x1e0] sm:$0xff]
      %v182 = vld [vmem:[%s1 + $0x1f0] sm:$0xff]
      %v183 = vld [vmem:[%s1 + $0x200] sm:$0xff]
      %v184 = vld [vmem:[%s1 + $0x210] sm:$0xff]
      %v185 = vld [vmem:[%s1 + $0x220] sm:$0xff]
      %v186 = vld [vmem:[%s1 + $0x230] sm:$0xff]
      %v187 = vld [vmem:[%s1 + $0x240] sm:$0xff]
      %v188 = vld [vmem:[%s1 + $0x250] sm:$0xff]
      %v189 = vld [vmem:[%s1 + $0x260] sm:$0xff]
      %v190 = vld [vmem:[%s1 + $0x270] sm:$0xff]
      %v191 = vld [vmem:[%s1 + $0x280] sm:$0xff]
      %v192 = vld [vmem:[%s1 + $0x290] sm:$0xff]
      %v193 = vld [vmem:[%s1 + $0x2a0] sm:$0xff]
      %v194 = vld [vmem:[%s1 + $0x2b0] sm:$0xff]
      %v195 = vld [vmem:[%s1 + $0x2c0] sm:$0xff]
      %v196 = vld [vmem:[%s1 + $0x2d0] sm:$0xff]
      %v197 = vld [vmem:[%s1 + $0x2e0] ss:$0 sm:$0xff]
      %v198 = vld [vmem:[%s1 + $0x2f0] sm:$0xff]
      %v199 = vld [vmem:[%s1 + $0x300] sm:$0xff]
      %v200 = vld [vmem:[%s1 + $0x310] ss:$0 sm:$0xff]
      %v201 = vld [vmem:[%s142] sm:$0xff]
      %v202 = vld [vmem:[%s142 + $0x8] sm:$0xff]
      %v203 = vld [vmem:[%s142 + $0x10] sm:$0xff]
      %v204 = vld [vmem:[%s142 + $0x18] sm:$0xff]
      %v205 = vld [vmem:[%s142 + $0x20] sm:$0xff]
      %v206 = vld [vmem:[%s142 + $0x28] sm:$0xff]
      %v207 = vld [vmem:[%s142 + $0x30] sm:$0xff]
      %v208 = vld [vmem:[%s142 + $0x38] sm:$0xff]
      %v209 = vld [vmem:[%s142 + $0x40] sm:$0xff]
      %v210 = vld [vmem:[%s142 + $0x48] sm:$0xff]
      %v211 = vld [vmem:[%s142 + $0x50] sm:$0xff]
      %v212 = vld [vmem:[%s142 + $0x58] sm:$0xff]
      %v213 = vld [vmem:[%s142 + $0x60] sm:$0xff]
      %v214 = vld [vmem:[%s142 + $0x68] sm:$0xff]
      %v215 = vld [vmem:[%s142 + $0x70] sm:$0xff]
      %vm216 = vcmask 64512
      %v218 = vsel %vm216, %v202, 0
      %220 = vmatpush.msra.mxu0 0.0
      %221 = vmatpush.msra.mxu0 0.0
      %222 = vmatpush.msra.mxu0 0.0
      %223 = vmatpush.msra.mxu0 0.0
      %224 = vmatpush.msra.mxu0 0.0
      %225 = vmatpush.msra.mxu0 0.0
      %226 = vmatpush.msra.mxu0 0.0
      %227 = vmatpush.msra.mxu0 0.0
      %228 = vmatpush.msra.mxu0 0.0
      %229 = vmatpush.msra.mxu0 0.0
      %230 = vmatpush.msra.mxu0 0.0
      %231 = vmatpush.msra.mxu0 0.0
      %232 = vmatpush.msra.mxu0 0.0
      %233 = vmatpush.msra.mxu0 0.0
      %234 = vmatpush.msra.mxu0 0.0
      %235 = vmatpush.msra.mxu0 %v150
      %236 = vmatmul.f32.gmra.mxu0 %v218
      %v237 = vpop.f32.mrf.mxu0
      %v238 = vadd.f32 0.0, %v237
      %239 = vdwg.mxu0
      %240 = vmatpush.msra.mxu0 0.0
      %241 = vmatpush.msra.mxu0 0.0
      %242 = vmatpush.msra.mxu0 0.0
      %243 = vmatpush.msra.mxu0 0.0
      %244 = vmatpush.msra.mxu0 0.0
      %245 = vmatpush.msra.mxu0 0.0
      %246 = vmatpush.msra.mxu0 0.0
      %247 = vmatpush.msra.mxu0 0.0
      %248 = vmatpush.msra.mxu0 0.0
      %249 = vmatpush.msra.mxu0 0.0
      %250 = vmatpush.msra.mxu0 0.0
      %251 = vmatpush.msra.mxu0 0.0
      %252 = vmatpush.msra.mxu0 0.0
      %253 = vmatpush.msra.mxu0 0.0
      %254 = vmatpush.msra.mxu0 0.0
      %255 = vmatpush.msra.mxu0 %v151
      %256 = vmatmul.f32.gmra.mxu0 %v218
      %v257 = vpop.f32.mrf.mxu0
      %v258 = vadd.f32 0.0, %v257
      %259 = vdwg.mxu0
      %v260 = vmul.f32 %v258, %v160
      %v261 = vmul.f32 %v258, %v161
      %v262 = vmul.f32 %v258, %v162
      %v263 = vmul.f32 %v258, %v163
      %v264 = vmul.f32 %v258, %v164
      %v265 = vmul.f32 %v258, %v165
      %v266 = vmul.f32 %v258, %v166
      %v267 = vmul.f32 %v258, %v167
      %v268 = vsel %vm216, %v260, 0.0
      %269 = vadd.xlane.f32.xlu0 %v268
      %v270 = vpop.xlane.xlu0 %269
      %v271 = vsel %vm216, %v261, 0.0
      %272 = vadd.xlane.f32.xlu0 %v271
      %v273 = vpop.xlane.xlu0 %272
      %v274 = vsel %vm216, %v262, 0.0
      %275 = vadd.xlane.f32.xlu0 %v274
      %v276 = vpop.xlane.xlu0 %275
      %v277 = vsel %vm216, %v263, 0.0
      %278 = vadd.xlane.f32.xlu0 %v277
      %v279 = vpop.xlane.xlu0 %278
      %v280 = vsel %vm216, %v264, 0.0
      %281 = vadd.xlane.f32.xlu0 %v280
      %v282 = vpop.xlane.xlu0 %281
      %v283 = vsel %vm216, %v265, 0.0
      %284 = vadd.xlane.f32.xlu0 %v283
      %v285 = vpop.xlane.xlu0 %284
      %v286 = vsel %vm216, %v266, 0.0
      %287 = vadd.xlane.f32.xlu0 %v286
      %v288 = vpop.xlane.xlu0 %287
      %v289 = vsel %vm216, %v267, 0.0
      %290 = vadd.xlane.f32.xlu0 %v289
      %v291 = vpop.xlane.xlu0 %290
      %vm292 = vcmask 326656
      %v294 = vsel %vm292, %v152, 0
      %v297 = vsel %vm292, %v153, 0
      %v300 = vsel %vm292, %v154, 0
      %v303 = vsel %vm292, %v155, 0
      %v306 = vsel %vm292, %v156, 0
      %v309 = vsel %vm292, %v157, 0
      %v312 = vsel %vm292, %v158, 0
      %v315 = vsel %vm292, %v159, 0
      %317 = vmatpush.msra.mxu0 0.0
      %318 = vmatpush.msra.mxu0 0.0
      %319 = vmatpush.msra.mxu0 0.0
      %320 = vmatpush.msra.mxu0 0.0
      %321 = vmatpush.msra.mxu0 0.0
      %322 = vmatpush.msra.mxu0 0.0
      %323 = vmatpush.msra.mxu0 0.0
      %324 = vmatpush.msra.mxu0 0.0
      %325 = vmatpush.msra.mxu0 0.0
      %326 = vmatpush.msra.mxu0 0.0
      %327 = vmatpush.msra.mxu0 0.0
      %328 = vmatpush.msra.mxu0 %v207
      %329 = vmatpush.msra.mxu0 %v206
      %330 = vmatpush.msra.mxu0 %v205
      %331 = vmatpush.msra.mxu0 %v204
      %332 = vmatpush.msra.mxu0 %v203
      %333 = vmatmul.f32.gmra.mxu0 %v294
      %v334 = vpop.f32.mrf.mxu0
      %v335 = vadd.f32 %v270, %v334
      %336 = vmatmul.f32.gmra.mxu0 %v297
      %v337 = vpop.f32.mrf.mxu0
      %v338 = vadd.f32 %v273, %v337
      %339 = vmatmul.f32.gmra.mxu0 %v300
      %v340 = vpop.f32.mrf.mxu0
      %v341 = vadd.f32 %v276, %v340
      %342 = vmatmul.f32.gmra.mxu0 %v303
      %v343 = vpop.f32.mrf.mxu0
      %v344 = vadd.f32 %v279, %v343
      %345 = vmatmul.f32.gmra.mxu0 %v306
      %v346 = vpop.f32.mrf.mxu0
      %v347 = vadd.f32 %v282, %v346
      %348 = vmatmul.f32.gmra.mxu0 %v309
      %v349 = vpop.f32.mrf.mxu0
      %v350 = vadd.f32 %v285, %v349
      %351 = vmatmul.f32.gmra.mxu0 %v312
      %v352 = vpop.f32.mrf.mxu0
      %v353 = vadd.f32 %v288, %v352
      %354 = vmatmul.f32.gmra.mxu0 %v315
      %v355 = vpop.f32.mrf.mxu0
      %v356 = vadd.f32 %v291, %v355
      %357 = vdwg.mxu0
      %vm358 = vcmp.ge.f32.partialorder %v335, 0.0
      %vm359 = vcmp.ge.f32.partialorder %v338, 0.0
      %vm360 = vcmp.ge.f32.partialorder %v341, 0.0
      %vm361 = vcmp.ge.f32.partialorder %v344, 0.0
      %vm362 = vcmp.ge.f32.partialorder %v347, 0.0
      %vm363 = vcmp.ge.f32.partialorder %v350, 0.0
      %vm364 = vcmp.ge.f32.partialorder %v353, 0.0
      %vm365 = vcmp.ge.f32.partialorder %v356, 0.0
      %v366 = vmul.f32 %v335, 0.2
      %v367 = vmul.f32 %v338, 0.2
      %v368 = vmul.f32 %v341, 0.2
      %v369 = vmul.f32 %v344, 0.2
      %v370 = vmul.f32 %v347, 0.2
      %v371 = vmul.f32 %v350, 0.2
      %v372 = vmul.f32 %v353, 0.2
      %v373 = vmul.f32 %v356, 0.2
      %v374 = vsel %vm358, %v335, %v366
      %v375 = vsel %vm359, %v338, %v367
      %v376 = vsel %vm360, %v341, %v368
      %v377 = vsel %vm361, %v344, %v369
      %v378 = vsel %vm362, %v347, %v370
      %v379 = vsel %vm363, %v350, %v371
      %v380 = vsel %vm364, %v353, %v372
      %v381 = vsel %vm365, %v356, %v373
      %vm382 = vcmp.gt.f32.partialorder %v201, 0.0
      %v383 = vsel %vm382, %v374, -1e+30
      %v384 = vsel %vm382, %v375, -1e+30
      %v385 = vsel %vm382, %v376, -1e+30
      %v386 = vsel %vm382, %v377, -1e+30
      %v387 = vsel %vm382, %v378, -1e+30
      %v388 = vsel %vm382, %v379, -1e+30
      %v389 = vsel %vm382, %v380, -1e+30
      %v390 = vsel %vm382, %v381, -1e+30
      %v391 = vsel %vm216, %v383, -inf
      %392 = vmax.xlane.f32.xlu0 %v391
      %v393 = vpop.xlane.xlu0 %392
      %v394 = vsel %vm216, %v384, -inf
      %395 = vmax.xlane.f32.xlu0 %v394
      %v396 = vpop.xlane.xlu0 %395
      %v397 = vsel %vm216, %v385, -inf
      %398 = vmax.xlane.f32.xlu0 %v397
      %v399 = vpop.xlane.xlu0 %398
      %v400 = vsel %vm216, %v386, -inf
      %401 = vmax.xlane.f32.xlu0 %v400
      %v402 = vpop.xlane.xlu0 %401
      %v403 = vsel %vm216, %v387, -inf
      %404 = vmax.xlane.f32.xlu0 %v403
      %v405 = vpop.xlane.xlu0 %404
      %v406 = vsel %vm216, %v388, -inf
      %407 = vmax.xlane.f32.xlu0 %v406
      %v408 = vpop.xlane.xlu0 %407
      %v409 = vsel %vm216, %v389, -inf
      %410 = vmax.xlane.f32.xlu0 %v409
      %v411 = vpop.xlane.xlu0 %410
      %v412 = vsel %vm216, %v390, -inf
      %413 = vmax.xlane.f32.xlu0 %v412
      %v414 = vpop.xlane.xlu0 %413
      %v415 = vsub.f32 %v383, %v393
      %v416 = vsub.f32 %v384, %v396
      %v417 = vsub.f32 %v385, %v399
      %v418 = vsub.f32 %v386, %v402
      %v419 = vsub.f32 %v387, %v405
      %v420 = vsub.f32 %v388, %v408
      %v421 = vsub.f32 %v389, %v411
      %v422 = vsub.f32 %v390, %v414
      %v423 = vmul.f32 %v415, 1.442695
      %v424 = vpow.pop %v423
      %v425 = vmul.f32 %v416, 1.442695
      %v426 = vpow.pop %v425
      %v427 = vmul.f32 %v417, 1.442695
      %v428 = vpow.pop %v427
      %v429 = vmul.f32 %v418, 1.442695
      %v430 = vpow.pop %v429
      %v431 = vmul.f32 %v419, 1.442695
      %v432 = vpow.pop %v431
      %v433 = vmul.f32 %v420, 1.442695
      %v434 = vpow.pop %v433
      %v435 = vmul.f32 %v421, 1.442695
      %v436 = vpow.pop %v435
      %v437 = vmul.f32 %v422, 1.442695
      %v438 = vpow.pop %v437
      %v439 = vmul.f32 %v424, %v201
      %v440 = vmul.f32 %v426, %v201
      %v441 = vmul.f32 %v428, %v201
      %v442 = vmul.f32 %v430, %v201
      %v443 = vmul.f32 %v432, %v201
      %v444 = vmul.f32 %v434, %v201
      %v445 = vmul.f32 %v436, %v201
      %v446 = vmul.f32 %v438, %v201
      %v447 = vsel %vm216, %v439, 0.0
      %448 = vadd.xlane.f32.xlu0 %v447
      %v449 = vpop.xlane.xlu0 %448
      %v450 = vsel %vm216, %v440, 0.0
      %451 = vadd.xlane.f32.xlu0 %v450
      %v452 = vpop.xlane.xlu0 %451
      %v453 = vsel %vm216, %v441, 0.0
      %454 = vadd.xlane.f32.xlu0 %v453
      %v455 = vpop.xlane.xlu0 %454
      %v456 = vsel %vm216, %v442, 0.0
      %457 = vadd.xlane.f32.xlu0 %v456
      %v458 = vpop.xlane.xlu0 %457
      %v459 = vsel %vm216, %v443, 0.0
      %460 = vadd.xlane.f32.xlu0 %v459
      %v461 = vpop.xlane.xlu0 %460
      %v462 = vsel %vm216, %v444, 0.0
      %463 = vadd.xlane.f32.xlu0 %v462
      %v464 = vpop.xlane.xlu0 %463
      %v465 = vsel %vm216, %v445, 0.0
      %466 = vadd.xlane.f32.xlu0 %v465
      %v467 = vpop.xlane.xlu0 %466
      %v468 = vsel %vm216, %v446, 0.0
      %469 = vadd.xlane.f32.xlu0 %v468
      %v470 = vpop.xlane.xlu0 %469
      %v471 = vrcp.pop %v449
      %v472 = vmul.f32 %v449, %v471
      %v473 = vsub.f32 1.0, %v472
      %v474 = vmul.f32 %v471, %v473
      %v475 = vadd.f32 %v471, %v474
      %vm476 = vweird.f32 %v449
      %vm477 = vweird.f32 %v471
      %vm478 = vmor %vm476, %vm477
      %v479 = vsel %vm478, %v471, %v475
      %v480 = vand.u32 2147483647, %v449
      %vm481 = vcmp.eq.f32.partialorder %v480, 8.507059e+37
      %v482 = vand.u32 %v449, 2147483648
      %v483 = vor.u32 1.1754944e-38, %v482
      %v484 = vsel %vm481, %v483, %v479
      %v485 = vrcp.pop %v452
      %v486 = vmul.f32 %v452, %v485
      %v487 = vsub.f32 1.0, %v486
      %v488 = vmul.f32 %v485, %v487
      %v489 = vadd.f32 %v485, %v488
      %vm490 = vweird.f32 %v452
      %vm491 = vweird.f32 %v485
      %vm492 = vmor %vm490, %vm491
      %v493 = vsel %vm492, %v485, %v489
      %v494 = vand.u32 2147483647, %v452
      %vm495 = vcmp.eq.f32.partialorder %v494, 8.507059e+37
      %v496 = vand.u32 %v452, 2147483648
      %v497 = vor.u32 1.1754944e-38, %v496
      %v498 = vsel %vm495, %v497, %v493
      %v499 = vrcp.pop %v455
      %v500 = vmul.f32 %v455, %v499
      %v501 = vsub.f32 1.0, %v500
      %v502 = vmul.f32 %v499, %v501
      %v503 = vadd.f32 %v499, %v502
      %vm504 = vweird.f32 %v455
      %vm505 = vweird.f32 %v499
      %vm506 = vmor %vm504, %vm505
      %v507 = vsel %vm506, %v499, %v503
      %v508 = vand.u32 2147483647, %v455
      %vm509 = vcmp.eq.f32.partialorder %v508, 8.507059e+37
      %v510 = vand.u32 %v455, 2147483648
      %v511 = vor.u32 1.1754944e-38, %v510
      %v512 = vsel %vm509, %v511, %v507
      %v513 = vrcp.pop %v458
      %v514 = vmul.f32 %v458, %v513
      %v515 = vsub.f32 1.0, %v514
      %v516 = vmul.f32 %v513, %v515
      %v517 = vadd.f32 %v513, %v516
      %vm518 = vweird.f32 %v458
      %vm519 = vweird.f32 %v513
      %vm520 = vmor %vm518, %vm519
      %v521 = vsel %vm520, %v513, %v517
      %v522 = vand.u32 2147483647, %v458
      %vm523 = vcmp.eq.f32.partialorder %v522, 8.507059e+37
      %v524 = vand.u32 %v458, 2147483648
      %v525 = vor.u32 1.1754944e-38, %v524
      %v526 = vsel %vm523, %v525, %v521
      %v527 = vrcp.pop %v461
      %v528 = vmul.f32 %v461, %v527
      %v529 = vsub.f32 1.0, %v528
      %v530 = vmul.f32 %v527, %v529
      %v531 = vadd.f32 %v527, %v530
      %vm532 = vweird.f32 %v461
      %vm533 = vweird.f32 %v527
      %vm534 = vmor %vm532, %vm533
      %v535 = vsel %vm534, %v527, %v531
      %v536 = vand.u32 2147483647, %v461
      %vm537 = vcmp.eq.f32.partialorder %v536, 8.507059e+37
      %v538 = vand.u32 %v461, 2147483648
      %v539 = vor.u32 1.1754944e-38, %v538
      %v540 = vsel %vm537, %v539, %v535
      %v541 = vrcp.pop %v464
      %v542 = vmul.f32 %v464, %v541
      %v543 = vsub.f32 1.0, %v542
      %v544 = vmul.f32 %v541, %v543
      %v545 = vadd.f32 %v541, %v544
      %vm546 = vweird.f32 %v464
      %vm547 = vweird.f32 %v541
      %vm548 = vmor %vm546, %vm547
      %v549 = vsel %vm548, %v541, %v545
      %v550 = vand.u32 2147483647, %v464
      %vm551 = vcmp.eq.f32.partialorder %v550, 8.507059e+37
      %v552 = vand.u32 %v464, 2147483648
      %v553 = vor.u32 1.1754944e-38, %v552
      %v554 = vsel %vm551, %v553, %v549
      %v555 = vrcp.pop %v467
      %v556 = vmul.f32 %v467, %v555
      %v557 = vsub.f32 1.0, %v556
      %v558 = vmul.f32 %v555, %v557
      %v559 = vadd.f32 %v555, %v558
      %vm560 = vweird.f32 %v467
      %vm561 = vweird.f32 %v555
      %vm562 = vmor %vm560, %vm561
      %v563 = vsel %vm562, %v555, %v559
      %v564 = vand.u32 2147483647, %v467
      %vm565 = vcmp.eq.f32.partialorder %v564, 8.507059e+37
      %v566 = vand.u32 %v467, 2147483648
      %v567 = vor.u32 1.1754944e-38, %v566
      %v568 = vsel %vm565, %v567, %v563
      %v569 = vrcp.pop %v470
      %v570 = vmul.f32 %v470, %v569
      %v571 = vsub.f32 1.0, %v570
      %v572 = vmul.f32 %v569, %v571
      %v573 = vadd.f32 %v569, %v572
      %vm574 = vweird.f32 %v470
      %vm575 = vweird.f32 %v569
      %vm576 = vmor %vm574, %vm575
      %v577 = vsel %vm576, %v569, %v573
      %v578 = vand.u32 2147483647, %v470
      %vm579 = vcmp.eq.f32.partialorder %v578, 8.507059e+37
      %v580 = vand.u32 %v470, 2147483648
      %v581 = vor.u32 1.1754944e-38, %v580
      %v582 = vsel %vm579, %v581, %v577
      %v583 = vmul.f32 %v439, %v484
      %v584 = vmul.f32 %v440, %v498
      %v585 = vmul.f32 %v441, %v512
      %v586 = vmul.f32 %v442, %v526
      %v587 = vmul.f32 %v443, %v540
      %v588 = vmul.f32 %v444, %v554
      %v589 = vmul.f32 %v445, %v568
      %v590 = vmul.f32 %v446, %v582
      %v592 = vsel %vm216, %v208, 0
      %v595 = vsel %vm216, %v209, 0
      %v598 = vsel %vm216, %v210, 0
      %v601 = vsel %vm216, %v211, 0
      %v604 = vsel %vm216, %v212, 0
      %v607 = vsel %vm216, %v213, 0
      %v610 = vsel %vm216, %v214, 0
      %v613 = vsel %vm216, %v215, 0
      %615 = vmatpush.msra.mxu0 0.0
      %616 = vmatpush.msra.mxu0 0.0
      %617 = vmatpush.msra.mxu0 0.0
      %618 = vmatpush.msra.mxu0 0.0
      %619 = vmatpush.msra.mxu0 0.0
      %620 = vmatpush.msra.mxu0 0.0
      %621 = vmatpush.msra.mxu0 0.0
      %622 = vmatpush.msra.mxu0 0.0
      %623 = vmatpush.msra.mxu0 0.0
      %624 = vmatpush.msra.mxu0 0.0
      %625 = vmatpush.msra.mxu0 0.0
      %626 = vmatpush.msra.mxu0 0.0
      %627 = vmatpush.msra.mxu0 0.0
      %628 = vmatpush.msra.mxu0 0.0
      %629 = vmatpush.msra.mxu0 0.0
      %630 = vmatpush.msra.mxu0 %v168
      %631 = vmatmul.f32.gmra.mxu0 %v592
      %v632 = vpop.f32.mrf.mxu0
      %v633 = vadd.f32 0.0, %v632
      %634 = vmatmul.f32.gmra.mxu0 %v595
      %v635 = vpop.f32.mrf.mxu0
      %v636 = vadd.f32 0.0, %v635
      %637 = vmatmul.f32.gmra.mxu0 %v598
      %v638 = vpop.f32.mrf.mxu0
      %v639 = vadd.f32 0.0, %v638
      %640 = vmatmul.f32.gmra.mxu0 %v601
      %v641 = vpop.f32.mrf.mxu0
      %v642 = vadd.f32 0.0, %v641
      %643 = vmatmul.f32.gmra.mxu0 %v604
      %v644 = vpop.f32.mrf.mxu0
      %v645 = vadd.f32 0.0, %v644
      %646 = vmatmul.f32.gmra.mxu0 %v607
      %v647 = vpop.f32.mrf.mxu0
      %v648 = vadd.f32 0.0, %v647
      %649 = vmatmul.f32.gmra.mxu0 %v610
      %v650 = vpop.f32.mrf.mxu0
      %v651 = vadd.f32 0.0, %v650
      %652 = vmatmul.f32.gmra.mxu0 %v613
      %v653 = vpop.f32.mrf.mxu0
      %v654 = vadd.f32 0.0, %v653
      %655 = vdwg.mxu0
      %v656 = vadd.f32 %v238, %v633
      %v657 = vadd.f32 %v238, %v636
      %v658 = vadd.f32 %v238, %v639
      %v659 = vadd.f32 %v238, %v642
      %v660 = vadd.f32 %v238, %v645
      %v661 = vadd.f32 %v238, %v648
      %v662 = vadd.f32 %v238, %v651
      %v663 = vadd.f32 %v238, %v654
      %v665 = vsel %vm216, %v583, 0
      %v668 = vsel %vm216, %v584, 0
      %v671 = vsel %vm216, %v585, 0
      %v674 = vsel %vm216, %v586, 0
      %v677 = vsel %vm216, %v587, 0
      %v680 = vsel %vm216, %v588, 0
      %v683 = vsel %vm216, %v589, 0
      %v686 = vsel %vm216, %v590, 0
      %688 = vmatpush.msra.mxu0 0.0
      %689 = vmatpush.msra.mxu0 0.0
      %690 = vmatpush.msra.mxu0 0.0
      %691 = vmatpush.msra.mxu0 0.0
      %692 = vmatpush.msra.mxu0 0.0
      %693 = vmatpush.msra.mxu0 0.0
      %694 = vmatpush.msra.mxu0 0.0
      %695 = vmatpush.msra.mxu0 0.0
      %696 = vmatpush.msra.mxu0 0.0
      %697 = vmatpush.msra.mxu0 0.0
      %698 = vmatpush.msra.mxu0 0.0
      %699 = vmatpush.msra.mxu0 0.0
      %700 = vmatpush.msra.mxu0 0.0
      %701 = vmatpush.msra.mxu0 0.0
      %702 = vmatpush.msra.mxu0 0.0
      %703 = vmatpush.msra.mxu0 %v170
      %704 = vmatmul.f32.gmra.mxu0 %v665
      %v705 = vpop.f32.mrf.mxu0
      %v706 = vadd.f32 0.0, %v705
      %707 = vmatmul.f32.gmra.mxu0 %v668
      %v708 = vpop.f32.mrf.mxu0
      %v709 = vadd.f32 0.0, %v708
      %710 = vmatmul.f32.gmra.mxu0 %v671
      %v711 = vpop.f32.mrf.mxu0
      %v712 = vadd.f32 0.0, %v711
      %713 = vmatmul.f32.gmra.mxu0 %v674
      %v714 = vpop.f32.mrf.mxu0
      %v715 = vadd.f32 0.0, %v714
      %716 = vmatmul.f32.gmra.mxu0 %v677
      %v717 = vpop.f32.mrf.mxu0
      %v718 = vadd.f32 0.0, %v717
      %719 = vmatmul.f32.gmra.mxu0 %v680
      %v720 = vpop.f32.mrf.mxu0
      %v721 = vadd.f32 0.0, %v720
      %722 = vmatmul.f32.gmra.mxu0 %v683
      %v723 = vpop.f32.mrf.mxu0
      %v724 = vadd.f32 0.0, %v723
      %725 = vmatmul.f32.gmra.mxu0 %v686
      %v726 = vpop.f32.mrf.mxu0
      %v727 = vadd.f32 0.0, %v726
      %728 = vdwg.mxu0
      %v729 = vmul.f32 %v706, %v171
      %v730 = vmul.f32 %v709, %v172
      %v731 = vmul.f32 %v712, %v173
      %v732 = vmul.f32 %v715, %v174
      %v733 = vmul.f32 %v718, %v175
      %v734 = vmul.f32 %v721, %v176
      %v735 = vmul.f32 %v724, %v177
      %v736 = vmul.f32 %v727, %v178
      %vm737 = vcmask 523264
      %v739 = vsel %vm737, %v729, 0
      %v742 = vsel %vm737, %v730, 0
      %v745 = vsel %vm737, %v731, 0
      %v748 = vsel %vm737, %v732, 0
      %v751 = vsel %vm737, %v733, 0
      %v754 = vsel %vm737, %v734, 0
      %v757 = vsel %vm737, %v735, 0
      %v760 = vsel %vm737, %v736, 0
      %762 = vmatpush.msra.mxu0 0.0
      %763 = vmatpush.msra.mxu0 0.0
      %764 = vmatpush.msra.mxu0 0.0
      %765 = vmatpush.msra.mxu0 0.0
      %766 = vmatpush.msra.mxu0 0.0
      %767 = vmatpush.msra.mxu0 0.0
      %768 = vmatpush.msra.mxu0 0.0
      %769 = vmatpush.msra.mxu0 0.0
      %770 = vmatpush.msra.mxu0 %v663
      %771 = vmatpush.msra.mxu0 %v662
      %772 = vmatpush.msra.mxu0 %v661
      %773 = vmatpush.msra.mxu0 %v660
      %774 = vmatpush.msra.mxu0 %v659
      %775 = vmatpush.msra.mxu0 %v658
      %776 = vmatpush.msra.mxu0 %v657
      %777 = vmatpush.msra.mxu0 %v656
      %778 = vmatmul.f32.gmra.mxu0 %v739
      %v779 = vpop.f32.mrf.mxu0
      %v780 = vadd.f32 0.0, %v779
      %781 = vmatmul.f32.gmra.mxu0 %v742
      %v782 = vpop.f32.mrf.mxu0
      %v783 = vadd.f32 0.0, %v782
      %784 = vmatmul.f32.gmra.mxu0 %v745
      %v785 = vpop.f32.mrf.mxu0
      %v786 = vadd.f32 0.0, %v785
      %787 = vmatmul.f32.gmra.mxu0 %v748
      %v788 = vpop.f32.mrf.mxu0
      %v789 = vadd.f32 0.0, %v788
      %790 = vmatmul.f32.gmra.mxu0 %v751
      %v791 = vpop.f32.mrf.mxu0
      %v792 = vadd.f32 0.0, %v791
      %793 = vmatmul.f32.gmra.mxu0 %v754
      %v794 = vpop.f32.mrf.mxu0
      %v795 = vadd.f32 0.0, %v794
      %796 = vmatmul.f32.gmra.mxu0 %v757
      %v797 = vpop.f32.mrf.mxu0
      %v798 = vadd.f32 0.0, %v797
      %799 = vmatmul.f32.gmra.mxu0 %v760
      %v800 = vpop.f32.mrf.mxu0
      %v801 = vadd.f32 0.0, %v800
      %802 = vdwg.mxu0
      %v803 = vmul.f32 %v780, %v179
      %v804 = vmul.f32 %v783, %v180
      %v805 = vmul.f32 %v786, %v181
      %v806 = vmul.f32 %v789, %v182
      %v807 = vmul.f32 %v792, %v183
      %v808 = vmul.f32 %v795, %v184
      %v809 = vmul.f32 %v798, %v185
      %v810 = vmul.f32 %v801, %v186
      %v811 = vadd.f32 %v803, %v804
      %v812 = vadd.f32 %v811, %v805
      %v813 = vadd.f32 %v812, %v806
      %v814 = vadd.f32 %v813, %v807
      %v815 = vadd.f32 %v814, %v808
      %v816 = vadd.f32 %v815, %v809
      %v817 = vadd.f32 %v816, %v810
      %819 = vrot.lane.b32.xlu0 %v238, 64
      %v820 = vpop.permute.xlu0 %819
      %v822 = vadd.f32 %v817, %v820
      %v823 = vadd.f32 %v822, %v169
      %v824 = vmax.f32 %v823, 0.0
      %v826 = vsel %vm737, %v824, 0
      %828 = vmatpush.msra.mxu0 0.0
      %829 = vmatpush.msra.mxu0 0.0
      %830 = vmatpush.msra.mxu0 0.0
      %831 = vmatpush.msra.mxu0 0.0
      %832 = vmatpush.msra.mxu0 0.0
      %833 = vmatpush.msra.mxu0 0.0
      %834 = vmatpush.msra.mxu0 0.0
      %835 = vmatpush.msra.mxu0 0.0
      %836 = vmatpush.msra.mxu0 %v194
      %837 = vmatpush.msra.mxu0 %v193
      %838 = vmatpush.msra.mxu0 %v192
      %839 = vmatpush.msra.mxu0 %v191
      %840 = vmatpush.msra.mxu0 %v190
      %841 = vmatpush.msra.mxu0 %v189
      %842 = vmatpush.msra.mxu0 %v188
      %843 = vmatpush.msra.mxu0 %v187
      %844 = vmatmul.f32.gmra.mxu0 %v826
      %v845 = vpop.f32.mrf.mxu0
      %v846 = vadd.f32 0.0, %v845
      %847 = vdwg.mxu0
      %849 = vrot.lane.b32.xlu0 %v846, 112
      %v850 = vpop.permute.xlu0 %849
      %852 = vxpose.xlu0.b32.start [1/16] %v850, 128
      %853 = vxpose.xlu0.b32.cont [2/16] 0.0, 128
      %854 = vxpose.xlu0.b32.cont [3/16] 0.0, 128
      %855 = vxpose.xlu0.b32.cont [4/16] 0.0, 128
      %856 = vxpose.xlu0.b32.cont [5/16] 0.0, 128
      %857 = vxpose.xlu0.b32.cont [6/16] 0.0, 128
      %858 = vxpose.xlu0.b32.cont [7/16] 0.0, 128
      %859 = vxpose.xlu0.b32.cont [8/16] 0.0, 128
      %860 = vxpose.xlu0.b32.cont [9/16] 0.0, 128
      %861 = vxpose.xlu0.b32.cont [10/16] 0.0, 128
      %862 = vxpose.xlu0.b32.cont [11/16] 0.0, 128
      %863 = vxpose.xlu0.b32.cont [12/16] 0.0, 128
      %864 = vxpose.xlu0.b32.cont [13/16] 0.0, 128
      %865 = vxpose.xlu0.b32.cont [14/16] 0.0, 128
      %866 = vxpose.xlu0.b32.cont [15/16] 0.0, 128
      %867 = vxpose.xlu0.b32.end [16/16] 0.0, 128
      %v868 = vpop.trf.xlu0
      %v869 = vpop.trf.xlu0
      %v870 = vpop.trf.xlu0
      %v871 = vpop.trf.xlu0
      %v872 = vpop.trf.xlu0
      %v873 = vpop.trf.xlu0
      %v874 = vpop.trf.xlu0
      %v875 = vpop.trf.xlu0
      %v876 = vpop.trf.xlu0
      %v877 = vpop.trf.xlu0
      %v878 = vpop.trf.xlu0
      %v879 = vpop.trf.xlu0
      %v880 = vpop.trf.xlu0
      %v881 = vpop.trf.xlu0
      %v882 = vpop.trf.xlu0
      %v883 = vpop.trf.xlu0
      %v884 = vperm.slane %v868, 0
      %885 = vset.pattern.permute.xlu0 17
      %886 = vperm.xlu0 %885, %v846
      %v887 = vpop.permute.xlu0 %886
      %v889 = vadd.f32 %v884, %v887
      %vm890 = vcmask 261120
      %v892 = vsel %vm890, %v195, 0
      %894 = vmatpush.msra.mxu0 0.0
      %895 = vmatpush.msra.mxu0 0.0
      %896 = vmatpush.msra.mxu0 0.0
      %897 = vmatpush.msra.mxu0 0.0
      %898 = vmatpush.msra.mxu0 0.0
      %899 = vmatpush.msra.mxu0 0.0
      %900 = vmatpush.msra.mxu0 0.0
      %901 = vmatpush.msra.mxu0 0.0
      %902 = vmatpush.msra.mxu0 0.0
      %903 = vmatpush.msra.mxu0 0.0
      %904 = vmatpush.msra.mxu0 0.0
      %905 = vmatpush.msra.mxu0 0.0
      %906 = vmatpush.msra.mxu0 %v207
      %907 = vmatpush.msra.mxu0 %v206
      %908 = vmatpush.msra.mxu0 %v205
      %909 = vmatpush.msra.mxu0 %v204
      %910 = vmatmul.f32.gmra.mxu0 %v892
      %v911 = vpop.f32.mrf.mxu0
      %v912 = vadd.f32 0.0, %v911
      %913 = vdwg.mxu0
      %v914 = vadd.f32 %v889, %v912
      %vm915 = vcmp.ge.f32.partialorder %v914, 0.0
      %v916 = vmul.f32 %v914, 0.2
      %v917 = vsel %vm915, %v914, %v916
      %v918 = vsel %vm382, %v917, -1e+30
      %v919 = vsel %vm216, %v918, -inf
      %920 = vmax.xlane.f32.xlu0 %v919
      %v921 = vpop.xlane.xlu0 %920
      %v922 = vsub.f32 %v918, %v921
      %v923 = vmul.f32 %v922, 1.442695
      %v924 = vpow.pop %v923
      %v925 = vmul.f32 %v924, %v201
      %v926 = vsel %vm216, %v925, 0.0
      %927 = vadd.xlane.f32.xlu0 %v926
      %v928 = vpop.xlane.xlu0 %927
      %v929 = vrcp.pop %v928
      %v930 = vmul.f32 %v928, %v929
      %v931 = vsub.f32 1.0, %v930
      %v932 = vmul.f32 %v929, %v931
      %v933 = vadd.f32 %v929, %v932
      %vm934 = vweird.f32 %v928
      %vm935 = vweird.f32 %v929
      %vm936 = vmor %vm934, %vm935
      %v937 = vsel %vm936, %v929, %v933
      %v938 = vand.u32 2147483647, %v928
      %vm939 = vcmp.eq.f32.partialorder %v938, 8.507059e+37
      %v940 = vand.u32 %v928, 2147483648
      %v941 = vor.u32 1.1754944e-38, %v940
      %v942 = vsel %vm939, %v941, %v937
      %v943 = vmul.f32 %v925, %v942
      %944 = vmatpush.msra.mxu0 0.0
      %945 = vmatpush.msra.mxu0 0.0
      %946 = vmatpush.msra.mxu0 0.0
      %947 = vmatpush.msra.mxu0 0.0
      %948 = vmatpush.msra.mxu0 0.0
      %949 = vmatpush.msra.mxu0 0.0
      %950 = vmatpush.msra.mxu0 0.0
      %951 = vmatpush.msra.mxu0 0.0
      %952 = vmatpush.msra.mxu0 0.0
      %953 = vmatpush.msra.mxu0 0.0
      %954 = vmatpush.msra.mxu0 0.0
      %955 = vmatpush.msra.mxu0 0.0
      %956 = vmatpush.msra.mxu0 0.0
      %957 = vmatpush.msra.mxu0 0.0
      %958 = vmatpush.msra.mxu0 0.0
      %959 = vmatpush.msra.mxu0 %v196
      %960 = vmatmul.f32.gmra.mxu0 %v592
      %v961 = vpop.f32.mrf.mxu0
      %v962 = vadd.f32 0.0, %v961
      %963 = vmatmul.f32.gmra.mxu0 %v595
      %v964 = vpop.f32.mrf.mxu0
      %v965 = vadd.f32 0.0, %v964
      %966 = vmatmul.f32.gmra.mxu0 %v598
      %v967 = vpop.f32.mrf.mxu0
      %v968 = vadd.f32 0.0, %v967
      %969 = vmatmul.f32.gmra.mxu0 %v601
      %v970 = vpop.f32.mrf.mxu0
      %v971 = vadd.f32 0.0, %v970
      %972 = vmatmul.f32.gmra.mxu0 %v604
      %v973 = vpop.f32.mrf.mxu0
      %v974 = vadd.f32 0.0, %v973
      %975 = vmatmul.f32.gmra.mxu0 %v607
      %v976 = vpop.f32.mrf.mxu0
      %v977 = vadd.f32 0.0, %v976
      %978 = vmatmul.f32.gmra.mxu0 %v610
      %v979 = vpop.f32.mrf.mxu0
      %v980 = vadd.f32 0.0, %v979
      %981 = vmatmul.f32.gmra.mxu0 %v613
      %v982 = vpop.f32.mrf.mxu0
      %v983 = vadd.f32 0.0, %v982
      %984 = vdwg.mxu0
      %v985 = vadd.f32 %v846, %v962
      %v986 = vadd.f32 %v846, %v965
      %v987 = vadd.f32 %v846, %v968
      %v988 = vadd.f32 %v846, %v971
      %v989 = vadd.f32 %v846, %v974
      %v990 = vadd.f32 %v846, %v977
      %v991 = vadd.f32 %v846, %v980
      %v992 = vadd.f32 %v846, %v983
      %v994 = vsel %vm216, %v943, 0
      %996 = vmatpush.msra.mxu0 0.0
      %997 = vmatpush.msra.mxu0 0.0
      %998 = vmatpush.msra.mxu0 0.0
      %999 = vmatpush.msra.mxu0 0.0
      %1000 = vmatpush.msra.mxu0 0.0
      %1001 = vmatpush.msra.mxu0 0.0
      %1002 = vmatpush.msra.mxu0 0.0
      %1003 = vmatpush.msra.mxu0 0.0
      %1004 = vmatpush.msra.mxu0 0.0
      %1005 = vmatpush.msra.mxu0 0.0
      %1006 = vmatpush.msra.mxu0 0.0
      %1007 = vmatpush.msra.mxu0 0.0
      %1008 = vmatpush.msra.mxu0 0.0
      %1009 = vmatpush.msra.mxu0 0.0
      %1010 = vmatpush.msra.mxu0 0.0
      %1011 = vmatpush.msra.mxu0 %v170
      %1012 = vmatmul.f32.gmra.mxu0 %v994
      %v1013 = vpop.f32.mrf.mxu0
      %v1014 = vadd.f32 0.0, %v1013
      %1015 = vdwg.mxu0
      %v1016 = vmul.f32 %v1014, %v198
      %1017 = vrot.lane.b32.xlu0 %v846, 120
      %v1018 = vpop.permute.xlu0 %1017
      %v1021 = vsel %vm737, %v1016, 0
      %1023 = vmatpush.msra.mxu0 0.0
      %1024 = vmatpush.msra.mxu0 0.0
      %1025 = vmatpush.msra.mxu0 0.0
      %1026 = vmatpush.msra.mxu0 0.0
      %1027 = vmatpush.msra.mxu0 0.0
      %1028 = vmatpush.msra.mxu0 0.0
      %1029 = vmatpush.msra.mxu0 0.0
      %1030 = vmatpush.msra.mxu0 0.0
      %1031 = vmatpush.msra.mxu0 %v992
      %1032 = vmatpush.msra.mxu0 %v991
      %1033 = vmatpush.msra.mxu0 %v990
      %1034 = vmatpush.msra.mxu0 %v989
      %1035 = vmatpush.msra.mxu0 %v988
      %1036 = vmatpush.msra.mxu0 %v987
      %1037 = vmatpush.msra.mxu0 %v986
      %1038 = vmatpush.msra.mxu0 %v985
      %1039 = vmatmul.f32.gmra.mxu0 %v1021
      %v1040 = vpop.f32.mrf.mxu0
      %v1041 = vadd.f32 %v1018, %v1040
      %1042 = vdwg.mxu0
      %v1043 = vadd.f32 %v1041, %v197
      %v1044 = vmax.f32 %v1043, 0.0
      %v1045 = vsel %vm216, %v201, 0.0
      %1046 = vadd.xlane.f32.xlu0 %v1045
      %v1047 = vpop.xlane.xlu0 %1046
      %v1048 = vmax.f32 %v1047, 1.0
      %v1050 = vsel %vm216, %v1044, 0
      %1052 = vmatpush.msra.mxu0 0.0
      %1053 = vmatpush.msra.mxu0 0.0
      %1054 = vmatpush.msra.mxu0 0.0
      %1055 = vmatpush.msra.mxu0 0.0
      %1056 = vmatpush.msra.mxu0 0.0
      %1057 = vmatpush.msra.mxu0 0.0
      %1058 = vmatpush.msra.mxu0 0.0
      %1059 = vmatpush.msra.mxu0 0.0
      %1060 = vmatpush.msra.mxu0 0.0
      %1061 = vmatpush.msra.mxu0 0.0
      %1062 = vmatpush.msra.mxu0 0.0
      %1063 = vmatpush.msra.mxu0 0.0
      %1064 = vmatpush.msra.mxu0 0.0
      %1065 = vmatpush.msra.mxu0 0.0
      %1066 = vmatpush.msra.mxu0 0.0
      %1067 = vmatpush.msra.mxu0 %v199
      %1068 = vmatmul.f32.gmra.mxu0 %v1050
      %v1069 = vpop.f32.mrf.mxu0
      %v1070 = vadd.f32 0.0, %v1069
      %1071 = vdwg.mxu0
      %1073 = vrot.lane.b32.xlu0 %v1070, 124
      %v1074 = vpop.permute.xlu0 %1073
      %v1077 = vsel %vm216, %v201, 0
      %1079 = vmatpush.msra.mxu0 0.0
      %1080 = vmatpush.msra.mxu0 0.0
      %1081 = vmatpush.msra.mxu0 0.0
      %1082 = vmatpush.msra.mxu0 0.0
      %1083 = vmatpush.msra.mxu0 0.0
      %1084 = vmatpush.msra.mxu0 0.0
      %1085 = vmatpush.msra.mxu0 0.0
      %1086 = vmatpush.msra.mxu0 0.0
      %1087 = vmatpush.msra.mxu0 0.0
      %1088 = vmatpush.msra.mxu0 0.0
      %1089 = vmatpush.msra.mxu0 0.0
      %1090 = vmatpush.msra.mxu0 0.0
      %1091 = vmatpush.msra.mxu0 0.0
      %1092 = vmatpush.msra.mxu0 0.0
      %1093 = vmatpush.msra.mxu0 0.0
      %1094 = vmatpush.msra.mxu0 %v1074
      %1095 = vmatmul.f32.gmra.mxu0 %v1077
      %v1096 = vpop.f32.mrf.mxu0
      %v1097 = vadd.f32 0.0, %v1096
      %1098 = vdwg.mxu0
      %v1099 = vrcp.pop %v1048
      %v1100 = vmul.f32 %v1048, %v1099
      %v1101 = vsub.f32 1.0, %v1100
      %v1102 = vmul.f32 %v1099, %v1101
      %v1103 = vadd.f32 %v1099, %v1102
      %vm1104 = vweird.f32 %v1048
      %vm1105 = vweird.f32 %v1099
      %vm1106 = vmor %vm1104, %vm1105
      %v1107 = vsel %vm1106, %v1099, %v1103
      %v1108 = vand.u32 2147483647, %v1048
      %vm1109 = vcmp.eq.f32.partialorder %v1108, 8.507059e+37
      %v1110 = vand.u32 %v1048, 2147483648
      %v1111 = vor.u32 1.1754944e-38, %v1110
      %v1112 = vsel %vm1109, %v1111, %v1107
      %v1113 = vmul.f32 %v1097, %v1112
      %v1114 = vadd.f32 %v1070, %v1113
      %v1115 = vadd.f32 %v1114, %v200
      %vm1116 = vcmask 31744
      %v1117 = vsel %vm1116, %v1115, -inf
      %1118 = vmax.xlane.f32.xlu0 %v1117
      %v1119 = vpop.xlane.xlu0 %1118
      %v1120 = vsub.f32 %v1115, %v1119
      %v1121 = vmul.f32 %v1120, 1.442695
      %v1122 = vpow.pop %v1121
      %v1123 = vsel %vm1116, %v1122, 0.0
      %1124 = vadd.xlane.f32.xlu0 %v1123
      %v1125 = vpop.xlane.xlu0 %1124
      %v1126 = vrcp.pop %v1125
      %v1127 = vmul.f32 %v1125, %v1126
      %v1128 = vsub.f32 1.0, %v1127
      %v1129 = vmul.f32 %v1126, %v1128
      %v1130 = vadd.f32 %v1126, %v1129
      %vm1131 = vweird.f32 %v1125
      %vm1132 = vweird.f32 %v1126
      %vm1133 = vmor %vm1131, %vm1132
      %v1134 = vsel %vm1133, %v1126, %v1130
      %v1135 = vand.u32 2147483647, %v1125
      %vm1136 = vcmp.eq.f32.partialorder %v1135, 8.507059e+37
      %v1137 = vand.u32 %v1125, 2147483648
      %v1138 = vor.u32 1.1754944e-38, %v1137
      %v1139 = vsel %vm1136, %v1138, %v1134
      %v1140 = vmul.f32 %v1122, %v1139
      %1141 = vst.msk [vmem:[%s148] sm:$0xff] %vm1116, %v1140
      %s1142 = scalar_lea.vmem %s142, 120
      %v1143 = vld [vmem:[%s1142] sm:$0xff]
      %v1144 = vld [vmem:[%s1142 + $0x8] sm:$0xff]
      %v1145 = vld [vmem:[%s1142 + $0x10] sm:$0xff]
      %v1146 = vld [vmem:[%s1142 + $0x18] sm:$0xff]
      %v1147 = vld [vmem:[%s1142 + $0x20] sm:$0xff]
      %v1148 = vld [vmem:[%s1142 + $0x28] sm:$0xff]
      %v1149 = vld [vmem:[%s1142 + $0x30] sm:$0xff]
      %v1150 = vld [vmem:[%s1142 + $0x38] sm:$0xff]
      %v1151 = vld [vmem:[%s1142 + $0x40] sm:$0xff]
      %v1152 = vld [vmem:[%s1142 + $0x48] sm:$0xff]
      %v1153 = vld [vmem:[%s1142 + $0x50] sm:$0xff]
      %v1154 = vld [vmem:[%s1142 + $0x58] sm:$0xff]
      %v1155 = vld [vmem:[%s1142 + $0x60] sm:$0xff]
      %v1156 = vld [vmem:[%s1142 + $0x68] sm:$0xff]
      %v1157 = vld [vmem:[%s1142 + $0x70] sm:$0xff]
      %v1159 = vsel %vm216, %v1144, 0
      %1161 = vmatpush.msra.mxu0 0.0
      %1162 = vmatpush.msra.mxu0 0.0
      %1163 = vmatpush.msra.mxu0 0.0
      %1164 = vmatpush.msra.mxu0 0.0
      %1165 = vmatpush.msra.mxu0 0.0
      %1166 = vmatpush.msra.mxu0 0.0
      %1167 = vmatpush.msra.mxu0 0.0
      %1168 = vmatpush.msra.mxu0 0.0
      %1169 = vmatpush.msra.mxu0 0.0
      %1170 = vmatpush.msra.mxu0 0.0
      %1171 = vmatpush.msra.mxu0 0.0
      %1172 = vmatpush.msra.mxu0 0.0
      %1173 = vmatpush.msra.mxu0 0.0
      %1174 = vmatpush.msra.mxu0 0.0
      %1175 = vmatpush.msra.mxu0 0.0
      %1176 = vmatpush.msra.mxu0 %v150
      %1177 = vmatmul.f32.gmra.mxu0 %v1159
      %v1178 = vpop.f32.mrf.mxu0
      %v1179 = vadd.f32 0.0, %v1178
      %1180 = vdwg.mxu0
      %1181 = vmatpush.msra.mxu0 0.0
      %1182 = vmatpush.msra.mxu0 0.0
      %1183 = vmatpush.msra.mxu0 0.0
      %1184 = vmatpush.msra.mxu0 0.0
      %1185 = vmatpush.msra.mxu0 0.0
      %1186 = vmatpush.msra.mxu0 0.0
      %1187 = vmatpush.msra.mxu0 0.0
      %1188 = vmatpush.msra.mxu0 0.0
      %1189 = vmatpush.msra.mxu0 0.0
      %1190 = vmatpush.msra.mxu0 0.0
      %1191 = vmatpush.msra.mxu0 0.0
      %1192 = vmatpush.msra.mxu0 0.0
      %1193 = vmatpush.msra.mxu0 0.0
      %1194 = vmatpush.msra.mxu0 0.0
      %1195 = vmatpush.msra.mxu0 0.0
      %1196 = vmatpush.msra.mxu0 %v151
      %1197 = vmatmul.f32.gmra.mxu0 %v1159
      %v1198 = vpop.f32.mrf.mxu0
      %v1199 = vadd.f32 0.0, %v1198
      %1200 = vdwg.mxu0
      %v1201 = vmul.f32 %v1199, %v160
      %v1202 = vmul.f32 %v1199, %v161
      %v1203 = vmul.f32 %v1199, %v162
      %v1204 = vmul.f32 %v1199, %v163
      %v1205 = vmul.f32 %v1199, %v164
      %v1206 = vmul.f32 %v1199, %v165
      %v1207 = vmul.f32 %v1199, %v166
      %v1208 = vmul.f32 %v1199, %v167
      %v1209 = vsel %vm216, %v1201, 0.0
      %1210 = vadd.xlane.f32.xlu0 %v1209
      %v1211 = vpop.xlane.xlu0 %1210
      %v1212 = vsel %vm216, %v1202, 0.0
      %1213 = vadd.xlane.f32.xlu0 %v1212
      %v1214 = vpop.xlane.xlu0 %1213
      %v1215 = vsel %vm216, %v1203, 0.0
      %1216 = vadd.xlane.f32.xlu0 %v1215
      %v1217 = vpop.xlane.xlu0 %1216
      %v1218 = vsel %vm216, %v1204, 0.0
      %1219 = vadd.xlane.f32.xlu0 %v1218
      %v1220 = vpop.xlane.xlu0 %1219
      %v1221 = vsel %vm216, %v1205, 0.0
      %1222 = vadd.xlane.f32.xlu0 %v1221
      %v1223 = vpop.xlane.xlu0 %1222
      %v1224 = vsel %vm216, %v1206, 0.0
      %1225 = vadd.xlane.f32.xlu0 %v1224
      %v1226 = vpop.xlane.xlu0 %1225
      %v1227 = vsel %vm216, %v1207, 0.0
      %1228 = vadd.xlane.f32.xlu0 %v1227
      %v1229 = vpop.xlane.xlu0 %1228
      %v1230 = vsel %vm216, %v1208, 0.0
      %1231 = vadd.xlane.f32.xlu0 %v1230
      %v1232 = vpop.xlane.xlu0 %1231
      %1233 = vmatpush.msra.mxu0 0.0
      %1234 = vmatpush.msra.mxu0 0.0
      %1235 = vmatpush.msra.mxu0 0.0
      %1236 = vmatpush.msra.mxu0 0.0
      %1237 = vmatpush.msra.mxu0 0.0
      %1238 = vmatpush.msra.mxu0 0.0
      %1239 = vmatpush.msra.mxu0 0.0
      %1240 = vmatpush.msra.mxu0 0.0
      %1241 = vmatpush.msra.mxu0 0.0
      %1242 = vmatpush.msra.mxu0 0.0
      %1243 = vmatpush.msra.mxu0 0.0
      %1244 = vmatpush.msra.mxu0 %v1149
      %1245 = vmatpush.msra.mxu0 %v1148
      %1246 = vmatpush.msra.mxu0 %v1147
      %1247 = vmatpush.msra.mxu0 %v1146
      %1248 = vmatpush.msra.mxu0 %v1145
      %1249 = vmatmul.f32.gmra.mxu0 %v294
      %v1250 = vpop.f32.mrf.mxu0
      %v1251 = vadd.f32 %v1211, %v1250
      %1252 = vmatmul.f32.gmra.mxu0 %v297
      %v1253 = vpop.f32.mrf.mxu0
      %v1254 = vadd.f32 %v1214, %v1253
      %1255 = vmatmul.f32.gmra.mxu0 %v300
      %v1256 = vpop.f32.mrf.mxu0
      %v1257 = vadd.f32 %v1217, %v1256
      %1258 = vmatmul.f32.gmra.mxu0 %v303
      %v1259 = vpop.f32.mrf.mxu0
      %v1260 = vadd.f32 %v1220, %v1259
      %1261 = vmatmul.f32.gmra.mxu0 %v306
      %v1262 = vpop.f32.mrf.mxu0
      %v1263 = vadd.f32 %v1223, %v1262
      %1264 = vmatmul.f32.gmra.mxu0 %v309
      %v1265 = vpop.f32.mrf.mxu0
      %v1266 = vadd.f32 %v1226, %v1265
      %1267 = vmatmul.f32.gmra.mxu0 %v312
      %v1268 = vpop.f32.mrf.mxu0
      %v1269 = vadd.f32 %v1229, %v1268
      %1270 = vmatmul.f32.gmra.mxu0 %v315
      %v1271 = vpop.f32.mrf.mxu0
      %v1272 = vadd.f32 %v1232, %v1271
      %1273 = vdwg.mxu0
      %vm1274 = vcmp.ge.f32.partialorder %v1251, 0.0
      %vm1275 = vcmp.ge.f32.partialorder %v1254, 0.0
      %vm1276 = vcmp.ge.f32.partialorder %v1257, 0.0
      %vm1277 = vcmp.ge.f32.partialorder %v1260, 0.0
      %vm1278 = vcmp.ge.f32.partialorder %v1263, 0.0
      %vm1279 = vcmp.ge.f32.partialorder %v1266, 0.0
      %vm1280 = vcmp.ge.f32.partialorder %v1269, 0.0
      %vm1281 = vcmp.ge.f32.partialorder %v1272, 0.0
      %v1282 = vmul.f32 %v1251, 0.2
      %v1283 = vmul.f32 %v1254, 0.2
      %v1284 = vmul.f32 %v1257, 0.2
      %v1285 = vmul.f32 %v1260, 0.2
      %v1286 = vmul.f32 %v1263, 0.2
      %v1287 = vmul.f32 %v1266, 0.2
      %v1288 = vmul.f32 %v1269, 0.2
      %v1289 = vmul.f32 %v1272, 0.2
      %v1290 = vsel %vm1274, %v1251, %v1282
      %v1291 = vsel %vm1275, %v1254, %v1283
      %v1292 = vsel %vm1276, %v1257, %v1284
      %v1293 = vsel %vm1277, %v1260, %v1285
      %v1294 = vsel %vm1278, %v1263, %v1286
      %v1295 = vsel %vm1279, %v1266, %v1287
      %v1296 = vsel %vm1280, %v1269, %v1288
      %v1297 = vsel %vm1281, %v1272, %v1289
      %vm1298 = vcmp.gt.f32.partialorder %v1143, 0.0
      %v1299 = vsel %vm1298, %v1290, -1e+30
      %v1300 = vsel %vm1298, %v1291, -1e+30
      %v1301 = vsel %vm1298, %v1292, -1e+30
      %v1302 = vsel %vm1298, %v1293, -1e+30
      %v1303 = vsel %vm1298, %v1294, -1e+30
      %v1304 = vsel %vm1298, %v1295, -1e+30
      %v1305 = vsel %vm1298, %v1296, -1e+30
      %v1306 = vsel %vm1298, %v1297, -1e+30
      %v1307 = vsel %vm216, %v1299, -inf
      %1308 = vmax.xlane.f32.xlu0 %v1307
      %v1309 = vpop.xlane.xlu0 %1308
      %v1310 = vsel %vm216, %v1300, -inf
      %1311 = vmax.xlane.f32.xlu0 %v1310
      %v1312 = vpop.xlane.xlu0 %1311
      %v1313 = vsel %vm216, %v1301, -inf
      %1314 = vmax.xlane.f32.xlu0 %v1313
      %v1315 = vpop.xlane.xlu0 %1314
      %v1316 = vsel %vm216, %v1302, -inf
      %1317 = vmax.xlane.f32.xlu0 %v1316
      %v1318 = vpop.xlane.xlu0 %1317
      %v1319 = vsel %vm216, %v1303, -inf
      %1320 = vmax.xlane.f32.xlu0 %v1319
      %v1321 = vpop.xlane.xlu0 %1320
      %v1322 = vsel %vm216, %v1304, -inf
      %1323 = vmax.xlane.f32.xlu0 %v1322
      %v1324 = vpop.xlane.xlu0 %1323
      %v1325 = vsel %vm216, %v1305, -inf
      %1326 = vmax.xlane.f32.xlu0 %v1325
      %v1327 = vpop.xlane.xlu0 %1326
      %v1328 = vsel %vm216, %v1306, -inf
      %1329 = vmax.xlane.f32.xlu0 %v1328
      %v1330 = vpop.xlane.xlu0 %1329
      %v1331 = vsub.f32 %v1299, %v1309
      %v1332 = vsub.f32 %v1300, %v1312
      %v1333 = vsub.f32 %v1301, %v1315
      %v1334 = vsub.f32 %v1302, %v1318
      %v1335 = vsub.f32 %v1303, %v1321
      %v1336 = vsub.f32 %v1304, %v1324
      %v1337 = vsub.f32 %v1305, %v1327
      %v1338 = vsub.f32 %v1306, %v1330
      %v1339 = vmul.f32 %v1331, 1.442695
      %v1340 = vpow.pop %v1339
      %v1341 = vmul.f32 %v1332, 1.442695
      %v1342 = vpow.pop %v1341
      %v1343 = vmul.f32 %v1333, 1.442695
      %v1344 = vpow.pop %v1343
      %v1345 = vmul.f32 %v1334, 1.442695
      %v1346 = vpow.pop %v1345
      %v1347 = vmul.f32 %v1335, 1.442695
      %v1348 = vpow.pop %v1347
      %v1349 = vmul.f32 %v1336, 1.442695
      %v1350 = vpow.pop %v1349
      %v1351 = vmul.f32 %v1337, 1.442695
      %v1352 = vpow.pop %v1351
      %v1353 = vmul.f32 %v1338, 1.442695
      %v1354 = vpow.pop %v1353
      %v1355 = vmul.f32 %v1340, %v1143
      %v1356 = vmul.f32 %v1342, %v1143
      %v1357 = vmul.f32 %v1344, %v1143
      %v1358 = vmul.f32 %v1346, %v1143
      %v1359 = vmul.f32 %v1348, %v1143
      %v1360 = vmul.f32 %v1350, %v1143
      %v1361 = vmul.f32 %v1352, %v1143
      %v1362 = vmul.f32 %v1354, %v1143
      %v1363 = vsel %vm216, %v1355, 0.0
      %1364 = vadd.xlane.f32.xlu0 %v1363
      %v1365 = vpop.xlane.xlu0 %1364
      %v1366 = vsel %vm216, %v1356, 0.0
      %1367 = vadd.xlane.f32.xlu0 %v1366
      %v1368 = vpop.xlane.xlu0 %1367
      %v1369 = vsel %vm216, %v1357, 0.0
      %1370 = vadd.xlane.f32.xlu0 %v1369
      %v1371 = vpop.xlane.xlu0 %1370
      %v1372 = vsel %vm216, %v1358, 0.0
      %1373 = vadd.xlane.f32.xlu0 %v1372
      %v1374 = vpop.xlane.xlu0 %1373
      %v1375 = vsel %vm216, %v1359, 0.0
      %1376 = vadd.xlane.f32.xlu0 %v1375
      %v1377 = vpop.xlane.xlu0 %1376
      %v1378 = vsel %vm216, %v1360, 0.0
      %1379 = vadd.xlane.f32.xlu0 %v1378
      %v1380 = vpop.xlane.xlu0 %1379
      %v1381 = vsel %vm216, %v1361, 0.0
      %1382 = vadd.xlane.f32.xlu0 %v1381
      %v1383 = vpop.xlane.xlu0 %1382
      %v1384 = vsel %vm216, %v1362, 0.0
      %1385 = vadd.xlane.f32.xlu0 %v1384
      %v1386 = vpop.xlane.xlu0 %1385
      %v1387 = vrcp.pop %v1365
      %v1388 = vmul.f32 %v1365, %v1387
      %v1389 = vsub.f32 1.0, %v1388
      %v1390 = vmul.f32 %v1387, %v1389
      %v1391 = vadd.f32 %v1387, %v1390
      %vm1392 = vweird.f32 %v1365
      %vm1393 = vweird.f32 %v1387
      %vm1394 = vmor %vm1392, %vm1393
      %v1395 = vsel %vm1394, %v1387, %v1391
      %v1396 = vand.u32 2147483647, %v1365
      %vm1397 = vcmp.eq.f32.partialorder %v1396, 8.507059e+37
      %v1398 = vand.u32 %v1365, 2147483648
      %v1399 = vor.u32 1.1754944e-38, %v1398
      %v1400 = vsel %vm1397, %v1399, %v1395
      %v1401 = vrcp.pop %v1368
      %v1402 = vmul.f32 %v1368, %v1401
      %v1403 = vsub.f32 1.0, %v1402
      %v1404 = vmul.f32 %v1401, %v1403
      %v1405 = vadd.f32 %v1401, %v1404
      %vm1406 = vweird.f32 %v1368
      %vm1407 = vweird.f32 %v1401
      %vm1408 = vmor %vm1406, %vm1407
      %v1409 = vsel %vm1408, %v1401, %v1405
      %v1410 = vand.u32 2147483647, %v1368
      %vm1411 = vcmp.eq.f32.partialorder %v1410, 8.507059e+37
      %v1412 = vand.u32 %v1368, 2147483648
      %v1413 = vor.u32 1.1754944e-38, %v1412
      %v1414 = vsel %vm1411, %v1413, %v1409
      %v1415 = vrcp.pop %v1371
      %v1416 = vmul.f32 %v1371, %v1415
      %v1417 = vsub.f32 1.0, %v1416
      %v1418 = vmul.f32 %v1415, %v1417
      %v1419 = vadd.f32 %v1415, %v1418
      %vm1420 = vweird.f32 %v1371
      %vm1421 = vweird.f32 %v1415
      %vm1422 = vmor %vm1420, %vm1421
      %v1423 = vsel %vm1422, %v1415, %v1419
      %v1424 = vand.u32 2147483647, %v1371
      %vm1425 = vcmp.eq.f32.partialorder %v1424, 8.507059e+37
      %v1426 = vand.u32 %v1371, 2147483648
      %v1427 = vor.u32 1.1754944e-38, %v1426
      %v1428 = vsel %vm1425, %v1427, %v1423
      %v1429 = vrcp.pop %v1374
      %v1430 = vmul.f32 %v1374, %v1429
      %v1431 = vsub.f32 1.0, %v1430
      %v1432 = vmul.f32 %v1429, %v1431
      %v1433 = vadd.f32 %v1429, %v1432
      %vm1434 = vweird.f32 %v1374
      %vm1435 = vweird.f32 %v1429
      %vm1436 = vmor %vm1434, %vm1435
      %v1437 = vsel %vm1436, %v1429, %v1433
      %v1438 = vand.u32 2147483647, %v1374
      %vm1439 = vcmp.eq.f32.partialorder %v1438, 8.507059e+37
      %v1440 = vand.u32 %v1374, 2147483648
      %v1441 = vor.u32 1.1754944e-38, %v1440
      %v1442 = vsel %vm1439, %v1441, %v1437
      %v1443 = vrcp.pop %v1377
      %v1444 = vmul.f32 %v1377, %v1443
      %v1445 = vsub.f32 1.0, %v1444
      %v1446 = vmul.f32 %v1443, %v1445
      %v1447 = vadd.f32 %v1443, %v1446
      %vm1448 = vweird.f32 %v1377
      %vm1449 = vweird.f32 %v1443
      %vm1450 = vmor %vm1448, %vm1449
      %v1451 = vsel %vm1450, %v1443, %v1447
      %v1452 = vand.u32 2147483647, %v1377
      %vm1453 = vcmp.eq.f32.partialorder %v1452, 8.507059e+37
      %v1454 = vand.u32 %v1377, 2147483648
      %v1455 = vor.u32 1.1754944e-38, %v1454
      %v1456 = vsel %vm1453, %v1455, %v1451
      %v1457 = vrcp.pop %v1380
      %v1458 = vmul.f32 %v1380, %v1457
      %v1459 = vsub.f32 1.0, %v1458
      %v1460 = vmul.f32 %v1457, %v1459
      %v1461 = vadd.f32 %v1457, %v1460
      %vm1462 = vweird.f32 %v1380
      %vm1463 = vweird.f32 %v1457
      %vm1464 = vmor %vm1462, %vm1463
      %v1465 = vsel %vm1464, %v1457, %v1461
      %v1466 = vand.u32 2147483647, %v1380
      %vm1467 = vcmp.eq.f32.partialorder %v1466, 8.507059e+37
      %v1468 = vand.u32 %v1380, 2147483648
      %v1469 = vor.u32 1.1754944e-38, %v1468
      %v1470 = vsel %vm1467, %v1469, %v1465
      %v1471 = vrcp.pop %v1383
      %v1472 = vmul.f32 %v1383, %v1471
      %v1473 = vsub.f32 1.0, %v1472
      %v1474 = vmul.f32 %v1471, %v1473
      %v1475 = vadd.f32 %v1471, %v1474
      %vm1476 = vweird.f32 %v1383
      %vm1477 = vweird.f32 %v1471
      %vm1478 = vmor %vm1476, %vm1477
      %v1479 = vsel %vm1478, %v1471, %v1475
      %v1480 = vand.u32 2147483647, %v1383
      %vm1481 = vcmp.eq.f32.partialorder %v1480, 8.507059e+37
      %v1482 = vand.u32 %v1383, 2147483648
      %v1483 = vor.u32 1.1754944e-38, %v1482
      %v1484 = vsel %vm1481, %v1483, %v1479
      %v1485 = vrcp.pop %v1386
      %v1486 = vmul.f32 %v1386, %v1485
      %v1487 = vsub.f32 1.0, %v1486
      %v1488 = vmul.f32 %v1485, %v1487
      %v1489 = vadd.f32 %v1485, %v1488
      %vm1490 = vweird.f32 %v1386
      %vm1491 = vweird.f32 %v1485
      %vm1492 = vmor %vm1490, %vm1491
      %v1493 = vsel %vm1492, %v1485, %v1489
      %v1494 = vand.u32 2147483647, %v1386
      %vm1495 = vcmp.eq.f32.partialorder %v1494, 8.507059e+37
      %v1496 = vand.u32 %v1386, 2147483648
      %v1497 = vor.u32 1.1754944e-38, %v1496
      %v1498 = vsel %vm1495, %v1497, %v1493
      %v1499 = vmul.f32 %v1355, %v1400
      %v1500 = vmul.f32 %v1356, %v1414
      %v1501 = vmul.f32 %v1357, %v1428
      %v1502 = vmul.f32 %v1358, %v1442
      %v1503 = vmul.f32 %v1359, %v1456
      %v1504 = vmul.f32 %v1360, %v1470
      %v1505 = vmul.f32 %v1361, %v1484
      %v1506 = vmul.f32 %v1362, %v1498
      %v1508 = vsel %vm216, %v1150, 0
      %v1511 = vsel %vm216, %v1151, 0
      %v1514 = vsel %vm216, %v1152, 0
      %v1517 = vsel %vm216, %v1153, 0
      %v1520 = vsel %vm216, %v1154, 0
      %v1523 = vsel %vm216, %v1155, 0
      %v1526 = vsel %vm216, %v1156, 0
      %v1529 = vsel %vm216, %v1157, 0
      %1531 = vmatpush.msra.mxu0 0.0
      %1532 = vmatpush.msra.mxu0 0.0
      %1533 = vmatpush.msra.mxu0 0.0
      %1534 = vmatpush.msra.mxu0 0.0
      %1535 = vmatpush.msra.mxu0 0.0
      %1536 = vmatpush.msra.mxu0 0.0
      %1537 = vmatpush.msra.mxu0 0.0
      %1538 = vmatpush.msra.mxu0 0.0
      %1539 = vmatpush.msra.mxu0 0.0
      %1540 = vmatpush.msra.mxu0 0.0
      %1541 = vmatpush.msra.mxu0 0.0
      %1542 = vmatpush.msra.mxu0 0.0
      %1543 = vmatpush.msra.mxu0 0.0
      %1544 = vmatpush.msra.mxu0 0.0
      %1545 = vmatpush.msra.mxu0 0.0
      %1546 = vmatpush.msra.mxu0 %v168
      %1547 = vmatmul.f32.gmra.mxu0 %v1508
      %v1548 = vpop.f32.mrf.mxu0
      %v1549 = vadd.f32 0.0, %v1548
      %1550 = vmatmul.f32.gmra.mxu0 %v1511
      %v1551 = vpop.f32.mrf.mxu0
      %v1552 = vadd.f32 0.0, %v1551
      %1553 = vmatmul.f32.gmra.mxu0 %v1514
      %v1554 = vpop.f32.mrf.mxu0
      %v1555 = vadd.f32 0.0, %v1554
      %1556 = vmatmul.f32.gmra.mxu0 %v1517
      %v1557 = vpop.f32.mrf.mxu0
      %v1558 = vadd.f32 0.0, %v1557
      %1559 = vmatmul.f32.gmra.mxu0 %v1520
      %v1560 = vpop.f32.mrf.mxu0
      %v1561 = vadd.f32 0.0, %v1560
      %1562 = vmatmul.f32.gmra.mxu0 %v1523
      %v1563 = vpop.f32.mrf.mxu0
      %v1564 = vadd.f32 0.0, %v1563
      %1565 = vmatmul.f32.gmra.mxu0 %v1526
      %v1566 = vpop.f32.mrf.mxu0
      %v1567 = vadd.f32 0.0, %v1566
      %1568 = vmatmul.f32.gmra.mxu0 %v1529
      %v1569 = vpop.f32.mrf.mxu0
      %v1570 = vadd.f32 0.0, %v1569
      %1571 = vdwg.mxu0
      %v1572 = vadd.f32 %v1179, %v1549
      %v1573 = vadd.f32 %v1179, %v1552
      %v1574 = vadd.f32 %v1179, %v1555
      %v1575 = vadd.f32 %v1179, %v1558
      %v1576 = vadd.f32 %v1179, %v1561
      %v1577 = vadd.f32 %v1179, %v1564
      %v1578 = vadd.f32 %v1179, %v1567
      %v1579 = vadd.f32 %v1179, %v1570
      %v1581 = vsel %vm216, %v1499, 0
      %v1584 = vsel %vm216, %v1500, 0
      %v1587 = vsel %vm216, %v1501, 0
      %v1590 = vsel %vm216, %v1502, 0
      %v1593 = vsel %vm216, %v1503, 0
      %v1596 = vsel %vm216, %v1504, 0
      %v1599 = vsel %vm216, %v1505, 0
      %v1602 = vsel %vm216, %v1506, 0
      %1604 = vmatpush.msra.mxu0 0.0
      %1605 = vmatpush.msra.mxu0 0.0
      %1606 = vmatpush.msra.mxu0 0.0
      %1607 = vmatpush.msra.mxu0 0.0
      %1608 = vmatpush.msra.mxu0 0.0
      %1609 = vmatpush.msra.mxu0 0.0
      %1610 = vmatpush.msra.mxu0 0.0
      %1611 = vmatpush.msra.mxu0 0.0
      %1612 = vmatpush.msra.mxu0 0.0
      %1613 = vmatpush.msra.mxu0 0.0
      %1614 = vmatpush.msra.mxu0 0.0
      %1615 = vmatpush.msra.mxu0 0.0
      %1616 = vmatpush.msra.mxu0 0.0
      %1617 = vmatpush.msra.mxu0 0.0
      %1618 = vmatpush.msra.mxu0 0.0
      %1619 = vmatpush.msra.mxu0 %v170
      %1620 = vmatmul.f32.gmra.mxu0 %v1581
      %v1621 = vpop.f32.mrf.mxu0
      %v1622 = vadd.f32 0.0, %v1621
      %1623 = vmatmul.f32.gmra.mxu0 %v1584
      %v1624 = vpop.f32.mrf.mxu0
      %v1625 = vadd.f32 0.0, %v1624
      %1626 = vmatmul.f32.gmra.mxu0 %v1587
      %v1627 = vpop.f32.mrf.mxu0
      %v1628 = vadd.f32 0.0, %v1627
      %1629 = vmatmul.f32.gmra.mxu0 %v1590
      %v1630 = vpop.f32.mrf.mxu0
      %v1631 = vadd.f32 0.0, %v1630
      %1632 = vmatmul.f32.gmra.mxu0 %v1593
      %v1633 = vpop.f32.mrf.mxu0
      %v1634 = vadd.f32 0.0, %v1633
      %1635 = vmatmul.f32.gmra.mxu0 %v1596
      %v1636 = vpop.f32.mrf.mxu0
      %v1637 = vadd.f32 0.0, %v1636
      %1638 = vmatmul.f32.gmra.mxu0 %v1599
      %v1639 = vpop.f32.mrf.mxu0
      %v1640 = vadd.f32 0.0, %v1639
      %1641 = vmatmul.f32.gmra.mxu0 %v1602
      %v1642 = vpop.f32.mrf.mxu0
      %v1643 = vadd.f32 0.0, %v1642
      %1644 = vdwg.mxu0
      %v1645 = vmul.f32 %v1622, %v171
      %v1646 = vmul.f32 %v1625, %v172
      %v1647 = vmul.f32 %v1628, %v173
      %v1648 = vmul.f32 %v1631, %v174
      %v1649 = vmul.f32 %v1634, %v175
      %v1650 = vmul.f32 %v1637, %v176
      %v1651 = vmul.f32 %v1640, %v177
      %v1652 = vmul.f32 %v1643, %v178
      %v1654 = vsel %vm737, %v1645, 0
      %v1657 = vsel %vm737, %v1646, 0
      %v1660 = vsel %vm737, %v1647, 0
      %v1663 = vsel %vm737, %v1648, 0
      %v1666 = vsel %vm737, %v1649, 0
      %v1669 = vsel %vm737, %v1650, 0
      %v1672 = vsel %vm737, %v1651, 0
      %v1675 = vsel %vm737, %v1652, 0
      %1677 = vmatpush.msra.mxu0 0.0
      %1678 = vmatpush.msra.mxu0 0.0
      %1679 = vmatpush.msra.mxu0 0.0
      %1680 = vmatpush.msra.mxu0 0.0
      %1681 = vmatpush.msra.mxu0 0.0
      %1682 = vmatpush.msra.mxu0 0.0
      %1683 = vmatpush.msra.mxu0 0.0
      %1684 = vmatpush.msra.mxu0 0.0
      %1685 = vmatpush.msra.mxu0 %v1579
      %1686 = vmatpush.msra.mxu0 %v1578
      %1687 = vmatpush.msra.mxu0 %v1577
      %1688 = vmatpush.msra.mxu0 %v1576
      %1689 = vmatpush.msra.mxu0 %v1575
      %1690 = vmatpush.msra.mxu0 %v1574
      %1691 = vmatpush.msra.mxu0 %v1573
      %1692 = vmatpush.msra.mxu0 %v1572
      %1693 = vmatmul.f32.gmra.mxu0 %v1654
      %v1694 = vpop.f32.mrf.mxu0
      %v1695 = vadd.f32 0.0, %v1694
      %1696 = vmatmul.f32.gmra.mxu0 %v1657
      %v1697 = vpop.f32.mrf.mxu0
      %v1698 = vadd.f32 0.0, %v1697
      %1699 = vmatmul.f32.gmra.mxu0 %v1660
      %v1700 = vpop.f32.mrf.mxu0
      %v1701 = vadd.f32 0.0, %v1700
      %1702 = vmatmul.f32.gmra.mxu0 %v1663
      %v1703 = vpop.f32.mrf.mxu0
      %v1704 = vadd.f32 0.0, %v1703
      %1705 = vmatmul.f32.gmra.mxu0 %v1666
      %v1706 = vpop.f32.mrf.mxu0
      %v1707 = vadd.f32 0.0, %v1706
      %1708 = vmatmul.f32.gmra.mxu0 %v1669
      %v1709 = vpop.f32.mrf.mxu0
      %v1710 = vadd.f32 0.0, %v1709
      %1711 = vmatmul.f32.gmra.mxu0 %v1672
      %v1712 = vpop.f32.mrf.mxu0
      %v1713 = vadd.f32 0.0, %v1712
      %1714 = vmatmul.f32.gmra.mxu0 %v1675
      %v1715 = vpop.f32.mrf.mxu0
      %v1716 = vadd.f32 0.0, %v1715
      %1717 = vdwg.mxu0
      %v1718 = vmul.f32 %v1695, %v179
      %v1719 = vmul.f32 %v1698, %v180
      %v1720 = vmul.f32 %v1701, %v181
      %v1721 = vmul.f32 %v1704, %v182
      %v1722 = vmul.f32 %v1707, %v183
      %v1723 = vmul.f32 %v1710, %v184
      %v1724 = vmul.f32 %v1713, %v185
      %v1725 = vmul.f32 %v1716, %v186
      %v1726 = vadd.f32 %v1718, %v1719
      %v1727 = vadd.f32 %v1726, %v1720
      %v1728 = vadd.f32 %v1727, %v1721
      %v1729 = vadd.f32 %v1728, %v1722
      %v1730 = vadd.f32 %v1729, %v1723
      %v1731 = vadd.f32 %v1730, %v1724
      %v1732 = vadd.f32 %v1731, %v1725
      %1734 = vrot.lane.b32.xlu0 %v1179, 64
      %v1735 = vpop.permute.xlu0 %1734
      %v1737 = vadd.f32 %v1732, %v1735
      %v1738 = vadd.f32 %v1737, %v169
      %v1739 = vmax.f32 %v1738, 0.0
      %v1741 = vsel %vm737, %v1739, 0
      %1743 = vmatpush.msra.mxu0 0.0
      %1744 = vmatpush.msra.mxu0 0.0
      %1745 = vmatpush.msra.mxu0 0.0
      %1746 = vmatpush.msra.mxu0 0.0
      %1747 = vmatpush.msra.mxu0 0.0
      %1748 = vmatpush.msra.mxu0 0.0
      %1749 = vmatpush.msra.mxu0 0.0
      %1750 = vmatpush.msra.mxu0 0.0
      %1751 = vmatpush.msra.mxu0 %v194
      %1752 = vmatpush.msra.mxu0 %v193
      %1753 = vmatpush.msra.mxu0 %v192
      %1754 = vmatpush.msra.mxu0 %v191
      %1755 = vmatpush.msra.mxu0 %v190
      %1756 = vmatpush.msra.mxu0 %v189
      %1757 = vmatpush.msra.mxu0 %v188
      %1758 = vmatpush.msra.mxu0 %v187
      %1759 = vmatmul.f32.gmra.mxu0 %v1741
      %v1760 = vpop.f32.mrf.mxu0
      %v1761 = vadd.f32 0.0, %v1760
      %1762 = vdwg.mxu0
      %1764 = vrot.lane.b32.xlu0 %v1761, 112
      %v1765 = vpop.permute.xlu0 %1764
      %1767 = vxpose.xlu0.b32.start [1/16] %v1765, 128
      %1768 = vxpose.xlu0.b32.cont [2/16] 0.0, 128
      %1769 = vxpose.xlu0.b32.cont [3/16] 0.0, 128
      %1770 = vxpose.xlu0.b32.cont [4/16] 0.0, 128
      %1771 = vxpose.xlu0.b32.cont [5/16] 0.0, 128
      %1772 = vxpose.xlu0.b32.cont [6/16] 0.0, 128
      %1773 = vxpose.xlu0.b32.cont [7/16] 0.0, 128
      %1774 = vxpose.xlu0.b32.cont [8/16] 0.0, 128
      %1775 = vxpose.xlu0.b32.cont [9/16] 0.0, 128
      %1776 = vxpose.xlu0.b32.cont [10/16] 0.0, 128
      %1777 = vxpose.xlu0.b32.cont [11/16] 0.0, 128
      %1778 = vxpose.xlu0.b32.cont [12/16] 0.0, 128
      %1779 = vxpose.xlu0.b32.cont [13/16] 0.0, 128
      %1780 = vxpose.xlu0.b32.cont [14/16] 0.0, 128
      %1781 = vxpose.xlu0.b32.cont [15/16] 0.0, 128
      %1782 = vxpose.xlu0.b32.end [16/16] 0.0, 128
      %v1783 = vpop.trf.xlu0
      %v1784 = vpop.trf.xlu0
      %v1785 = vpop.trf.xlu0
      %v1786 = vpop.trf.xlu0
      %v1787 = vpop.trf.xlu0
      %v1788 = vpop.trf.xlu0
      %v1789 = vpop.trf.xlu0
      %v1790 = vpop.trf.xlu0
      %v1791 = vpop.trf.xlu0
      %v1792 = vpop.trf.xlu0
      %v1793 = vpop.trf.xlu0
      %v1794 = vpop.trf.xlu0
      %v1795 = vpop.trf.xlu0
      %v1796 = vpop.trf.xlu0
      %v1797 = vpop.trf.xlu0
      %v1798 = vpop.trf.xlu0
      %v1799 = vperm.slane %v1783, 0
      %1800 = vset.pattern.permute.xlu0 17
      %1801 = vperm.xlu0 %1800, %v1761
      %v1802 = vpop.permute.xlu0 %1801
      %v1804 = vadd.f32 %v1799, %v1802
      %1805 = vmatpush.msra.mxu0 0.0
      %1806 = vmatpush.msra.mxu0 0.0
      %1807 = vmatpush.msra.mxu0 0.0
      %1808 = vmatpush.msra.mxu0 0.0
      %1809 = vmatpush.msra.mxu0 0.0
      %1810 = vmatpush.msra.mxu0 0.0
      %1811 = vmatpush.msra.mxu0 0.0
      %1812 = vmatpush.msra.mxu0 0.0
      %1813 = vmatpush.msra.mxu0 0.0
      %1814 = vmatpush.msra.mxu0 0.0
      %1815 = vmatpush.msra.mxu0 0.0
      %1816 = vmatpush.msra.mxu0 0.0
      %1817 = vmatpush.msra.mxu0 %v1149
      %1818 = vmatpush.msra.mxu0 %v1148
      %1819 = vmatpush.msra.mxu0 %v1147
      %1820 = vmatpush.msra.mxu0 %v1146
      %1821 = vmatmul.f32.gmra.mxu0 %v892
      %v1822 = vpop.f32.mrf.mxu0
      %v1823 = vadd.f32 0.0, %v1822
      %1824 = vdwg.mxu0
      %v1825 = vadd.f32 %v1804, %v1823
      %vm1826 = vcmp.ge.f32.partialorder %v1825, 0.0
      %v1827 = vmul.f32 %v1825, 0.2
      %v1828 = vsel %vm1826, %v1825, %v1827
      %v1829 = vsel %vm1298, %v1828, -1e+30
      %v1830 = vsel %vm216, %v1829, -inf
      %1831 = vmax.xlane.f32.xlu0 %v1830
      %v1832 = vpop.xlane.xlu0 %1831
      %v1833 = vsub.f32 %v1829, %v1832
      %v1834 = vmul.f32 %v1833, 1.442695
      %v1835 = vpow.pop %v1834
      %v1836 = vmul.f32 %v1835, %v1143
      %v1837 = vsel %vm216, %v1836, 0.0
      %1838 = vadd.xlane.f32.xlu0 %v1837
      %v1839 = vpop.xlane.xlu0 %1838
      %v1840 = vrcp.pop %v1839
      %v1841 = vmul.f32 %v1839, %v1840
      %v1842 = vsub.f32 1.0, %v1841
      %v1843 = vmul.f32 %v1840, %v1842
      %v1844 = vadd.f32 %v1840, %v1843
      %vm1845 = vweird.f32 %v1839
      %vm1846 = vweird.f32 %v1840
      %vm1847 = vmor %vm1845, %vm1846
      %v1848 = vsel %vm1847, %v1840, %v1844
      %v1849 = vand.u32 2147483647, %v1839
      %vm1850 = vcmp.eq.f32.partialorder %v1849, 8.507059e+37
      %v1851 = vand.u32 %v1839, 2147483648
      %v1852 = vor.u32 1.1754944e-38, %v1851
      %v1853 = vsel %vm1850, %v1852, %v1848
      %v1854 = vmul.f32 %v1836, %v1853
      %1855 = vmatpush.msra.mxu0 0.0
      %1856 = vmatpush.msra.mxu0 0.0
      %1857 = vmatpush.msra.mxu0 0.0
      %1858 = vmatpush.msra.mxu0 0.0
      %1859 = vmatpush.msra.mxu0 0.0
      %1860 = vmatpush.msra.mxu0 0.0
      %1861 = vmatpush.msra.mxu0 0.0
      %1862 = vmatpush.msra.mxu0 0.0
      %1863 = vmatpush.msra.mxu0 0.0
      %1864 = vmatpush.msra.mxu0 0.0
      %1865 = vmatpush.msra.mxu0 0.0
      %1866 = vmatpush.msra.mxu0 0.0
      %1867 = vmatpush.msra.mxu0 0.0
      %1868 = vmatpush.msra.mxu0 0.0
      %1869 = vmatpush.msra.mxu0 0.0
      %1870 = vmatpush.msra.mxu0 %v196
      %1871 = vmatmul.f32.gmra.mxu0 %v1508
      %v1872 = vpop.f32.mrf.mxu0
      %v1873 = vadd.f32 0.0, %v1872
      %1874 = vmatmul.f32.gmra.mxu0 %v1511
      %v1875 = vpop.f32.mrf.mxu0
      %v1876 = vadd.f32 0.0, %v1875
      %1877 = vmatmul.f32.gmra.mxu0 %v1514
      %v1878 = vpop.f32.mrf.mxu0
      %v1879 = vadd.f32 0.0, %v1878
      %1880 = vmatmul.f32.gmra.mxu0 %v1517
      %v1881 = vpop.f32.mrf.mxu0
      %v1882 = vadd.f32 0.0, %v1881
      %1883 = vmatmul.f32.gmra.mxu0 %v1520
      %v1884 = vpop.f32.mrf.mxu0
      %v1885 = vadd.f32 0.0, %v1884
      %1886 = vmatmul.f32.gmra.mxu0 %v1523
      %v1887 = vpop.f32.mrf.mxu0
      %v1888 = vadd.f32 0.0, %v1887
      %1889 = vmatmul.f32.gmra.mxu0 %v1526
      %v1890 = vpop.f32.mrf.mxu0
      %v1891 = vadd.f32 0.0, %v1890
      %1892 = vmatmul.f32.gmra.mxu0 %v1529
      %v1893 = vpop.f32.mrf.mxu0
      %v1894 = vadd.f32 0.0, %v1893
      %1895 = vdwg.mxu0
      %v1896 = vadd.f32 %v1761, %v1873
      %v1897 = vadd.f32 %v1761, %v1876
      %v1898 = vadd.f32 %v1761, %v1879
      %v1899 = vadd.f32 %v1761, %v1882
      %v1900 = vadd.f32 %v1761, %v1885
      %v1901 = vadd.f32 %v1761, %v1888
      %v1902 = vadd.f32 %v1761, %v1891
      %v1903 = vadd.f32 %v1761, %v1894
      %v1905 = vsel %vm216, %v1854, 0
      %1907 = vmatpush.msra.mxu0 0.0
      %1908 = vmatpush.msra.mxu0 0.0
      %1909 = vmatpush.msra.mxu0 0.0
      %1910 = vmatpush.msra.mxu0 0.0
      %1911 = vmatpush.msra.mxu0 0.0
      %1912 = vmatpush.msra.mxu0 0.0
      %1913 = vmatpush.msra.mxu0 0.0
      %1914 = vmatpush.msra.mxu0 0.0
      %1915 = vmatpush.msra.mxu0 0.0
      %1916 = vmatpush.msra.mxu0 0.0
      %1917 = vmatpush.msra.mxu0 0.0
      %1918 = vmatpush.msra.mxu0 0.0
      %1919 = vmatpush.msra.mxu0 0.0
      %1920 = vmatpush.msra.mxu0 0.0
      %1921 = vmatpush.msra.mxu0 0.0
      %1922 = vmatpush.msra.mxu0 %v170
      %1923 = vmatmul.f32.gmra.mxu0 %v1905
      %v1924 = vpop.f32.mrf.mxu0
      %v1925 = vadd.f32 0.0, %v1924
      %1926 = vdwg.mxu0
      %v1927 = vmul.f32 %v1925, %v198
      %1928 = vrot.lane.b32.xlu0 %v1761, 120
      %v1929 = vpop.permute.xlu0 %1928
      %v1932 = vsel %vm737, %v1927, 0
      %1934 = vmatpush.msra.mxu0 0.0
      %1935 = vmatpush.msra.mxu0 0.0
      %1936 = vmatpush.msra.mxu0 0.0
      %1937 = vmatpush.msra.mxu0 0.0
      %1938 = vmatpush.msra.mxu0 0.0
      %1939 = vmatpush.msra.mxu0 0.0
      %1940 = vmatpush.msra.mxu0 0.0
      %1941 = vmatpush.msra.mxu0 0.0
      %1942 = vmatpush.msra.mxu0 %v1903
      %1943 = vmatpush.msra.mxu0 %v1902
      %1944 = vmatpush.msra.mxu0 %v1901
      %1945 = vmatpush.msra.mxu0 %v1900
      %1946 = vmatpush.msra.mxu0 %v1899
      %1947 = vmatpush.msra.mxu0 %v1898
      %1948 = vmatpush.msra.mxu0 %v1897
      %1949 = vmatpush.msra.mxu0 %v1896
      %1950 = vmatmul.f32.gmra.mxu0 %v1932
      %v1951 = vpop.f32.mrf.mxu0
      %v1952 = vadd.f32 %v1929, %v1951
      %1953 = vdwg.mxu0
      %v1954 = vadd.f32 %v1952, %v197
      %v1955 = vmax.f32 %v1954, 0.0
      %v1956 = vsel %vm216, %v1143, 0.0
      %1957 = vadd.xlane.f32.xlu0 %v1956
      %v1958 = vpop.xlane.xlu0 %1957
      %v1959 = vmax.f32 %v1958, 1.0
      %v1961 = vsel %vm216, %v1955, 0
      %1963 = vmatpush.msra.mxu0 0.0
      %1964 = vmatpush.msra.mxu0 0.0
      %1965 = vmatpush.msra.mxu0 0.0
      %1966 = vmatpush.msra.mxu0 0.0
      %1967 = vmatpush.msra.mxu0 0.0
      %1968 = vmatpush.msra.mxu0 0.0
      %1969 = vmatpush.msra.mxu0 0.0
      %1970 = vmatpush.msra.mxu0 0.0
      %1971 = vmatpush.msra.mxu0 0.0
      %1972 = vmatpush.msra.mxu0 0.0
      %1973 = vmatpush.msra.mxu0 0.0
      %1974 = vmatpush.msra.mxu0 0.0
      %1975 = vmatpush.msra.mxu0 0.0
      %1976 = vmatpush.msra.mxu0 0.0
      %1977 = vmatpush.msra.mxu0 0.0
      %1978 = vmatpush.msra.mxu0 %v199
      %1979 = vmatmul.f32.gmra.mxu0 %v1961
      %v1980 = vpop.f32.mrf.mxu0
      %v1981 = vadd.f32 0.0, %v1980
      %1982 = vdwg.mxu0
      %1984 = vrot.lane.b32.xlu0 %v1981, 124
      %v1985 = vpop.permute.xlu0 %1984
      %v1988 = vsel %vm216, %v1143, 0
      %1990 = vmatpush.msra.mxu0 0.0
      %1991 = vmatpush.msra.mxu0 0.0
      %1992 = vmatpush.msra.mxu0 0.0
      %1993 = vmatpush.msra.mxu0 0.0
      %1994 = vmatpush.msra.mxu0 0.0
      %1995 = vmatpush.msra.mxu0 0.0
      %1996 = vmatpush.msra.mxu0 0.0
      %1997 = vmatpush.msra.mxu0 0.0
      %1998 = vmatpush.msra.mxu0 0.0
      %1999 = vmatpush.msra.mxu0 0.0
      %2000 = vmatpush.msra.mxu0 0.0
      %2001 = vmatpush.msra.mxu0 0.0
      %2002 = vmatpush.msra.mxu0 0.0
      %2003 = vmatpush.msra.mxu0 0.0
      %2004 = vmatpush.msra.mxu0 0.0
      %2005 = vmatpush.msra.mxu0 %v1985
      %2006 = vmatmul.f32.gmra.mxu0 %v1988
      %v2007 = vpop.f32.mrf.mxu0
      %v2008 = vadd.f32 0.0, %v2007
      %2009 = vdwg.mxu0
      %v2010 = vrcp.pop %v1959
      %v2011 = vmul.f32 %v1959, %v2010
      %v2012 = vsub.f32 1.0, %v2011
      %v2013 = vmul.f32 %v2010, %v2012
      %v2014 = vadd.f32 %v2010, %v2013
      %vm2015 = vweird.f32 %v1959
      %vm2016 = vweird.f32 %v2010
      %vm2017 = vmor %vm2015, %vm2016
      %v2018 = vsel %vm2017, %v2010, %v2014
      %v2019 = vand.u32 2147483647, %v1959
      %vm2020 = vcmp.eq.f32.partialorder %v2019, 8.507059e+37
      %v2021 = vand.u32 %v1959, 2147483648
      %v2022 = vor.u32 1.1754944e-38, %v2021
      %v2023 = vsel %vm2020, %v2022, %v2018
      %v2024 = vmul.f32 %v2008, %v2023
      %v2025 = vadd.f32 %v1981, %v2024
      %v2026 = vadd.f32 %v2025, %v200
      %v2027 = vsel %vm1116, %v2026, -inf
      %2028 = vmax.xlane.f32.xlu0 %v2027
      %v2029 = vpop.xlane.xlu0 %2028
      %v2030 = vsub.f32 %v2026, %v2029
      %v2031 = vmul.f32 %v2030, 1.442695
      %v2032 = vpow.pop %v2031
      %v2033 = vsel %vm1116, %v2032, 0.0
      %2034 = vadd.xlane.f32.xlu0 %v2033
      %v2035 = vpop.xlane.xlu0 %2034
      %v2036 = vrcp.pop %v2035
      %v2037 = vmul.f32 %v2035, %v2036
      %v2038 = vsub.f32 1.0, %v2037
      %v2039 = vmul.f32 %v2036, %v2038
      %v2040 = vadd.f32 %v2036, %v2039
      %vm2041 = vweird.f32 %v2035
      %vm2042 = vweird.f32 %v2036
      %vm2043 = vmor %vm2041, %vm2042
      %v2044 = vsel %vm2043, %v2036, %v2040
      %v2045 = vand.u32 2147483647, %v2035
      %vm2046 = vcmp.eq.f32.partialorder %v2045, 8.507059e+37
      %v2047 = vand.u32 %v2035, 2147483648
      %v2048 = vor.u32 1.1754944e-38, %v2047
      %v2049 = vsel %vm2046, %v2048, %v2044
      %v2050 = vmul.f32 %v2032, %v2049
      %2051 = vst.msk [vmem:[%s148 + $0x8] sm:$0xff] %vm1116, %v2050
      %s2052 = smul.u32 2, %s13
      %p2053 = scmp.lt.s32.totalorder %s2052, 3
      %s2054 = scalar_select %p2053, %s2052, 3
      %s2055 = smul.addr %s2054, 8
      %s2056 = scalar_lea.vmem %s2, %s2055
      // Predicated region
      $region29: #{model_forward.1} parent=27 // pred_check
        %p2057 = pneg %p78
      $region30: #{model_forward.1} parent=27 // pred_check_branch
        %2059 = sbr.rel (%p2057) target = $region32
      $region31: #{model_forward.1} parent=27 // pred_region
        %s2060 = smul.u32 2, %s13
      $region32: #{model_forward.1} parent=27 // pred_fallthru
        _
    $region28: #{model_forward.1} parent=5 // pred_fallthru
      _
    %p2061 = scmp.le.s32.totalorder 2, %s8
    // Predicated region
    $region33: #{model_forward.1} parent=5 // pred_check
      %p2062 = pneg %p2061
    $region34: #{model_forward.1} parent=5 // pred_check_branch
      %2064 = sbr.rel (%p2062) target = $region36
    $region35: #{model_forward.1} parent=5 // pred_region
      %s2065 = ssub.s32 %s8, 2
      // Predicated region
      $region37: #{model_forward.1} parent=35 // pred_check
        %p2066 = pneg %p84
      $region38: #{model_forward.1} parent=35 // pred_check_branch
        %2068 = sbr.rel (%p2066) target = $region40
      $region39: #{model_forward.1} parent=35 // pred_region
        %s2069 = smul.u32 2, %s14
        %p2070 = scmp.lt.s32.totalorder %s2069, 3
        %s2071 = scalar_select %p2070, %s2069, 3
        %s2072 = smul.addr %s2071, 8
        %s2073 = scalar_lea.vmem %s2, %s2072
      $region40: #{model_forward.1} parent=35 // pred_fallthru
        _
    $region36: #{model_forward.1} parent=5 // pred_fallthru
      _
  $region6: #{model_forward.1} parent=0 // loop_footer
    %s12 = sadd.s32 1, %s8
  $region7: #{model_forward.1} parent=0 // loop_footer_branch
    %7 = sbr.rel target = $region3
  $region8: #{model_forward.1} parent=0 // loop_exit
    _

</llo_original>
